<compile_context>
chip_gen: v7x
topology: tpu7x:2x2x1
jax: 0.10.0
libtpu: 0.0.40
codegen_flags: <defaults>
</compile_context>

<pallas_src>
import functools

import jax
import jax.numpy as jnp
from jax.experimental import pallas as pl
from jax.experimental.pallas import tpu as pltpu


def _round_up(n, m):
    return ((n + m - 1) // m) * m


def _gru_kernel(x_ref, wih_ref, whh_ref, bgi_ref, bhn_ref, wout_ref, bout_ref,
                out_ref, gi_ref, hrelu_ref, *, seq_len, batch_chunk):
    S, Bc = seq_len, batch_chunk
    Hk = whh_ref.shape[0]                # hidden dim padded to sublanes
    bf16 = jnp.bfloat16

    # ---- Phase 1: input projection for all timesteps (one bf16 MXU pass). ---
    gi = jnp.dot(x_ref[...].astype(bf16), wih_ref[...],
                 preferred_element_type=jnp.float32)
    gi_ref[...] = gi + bgi_ref[...]

    # Loop-invariant operands.  After gate packing the recurrent weight is only
    # (Hk, 3*Hk<=128) bf16 (~2 vregs for H=32), so holding it live across the
    # unrolled recurrence is cheap and avoids re-streaming it from VMEM.
    whh = whh_ref[...]                   # (Hk, Gp) bf16
    bhn = bhn_ref[...]                   # (1, Hk)  f32

    def step(t, h):
        row = t * Bc
        gi_t = gi_ref[pl.ds(row, Bc), :]                        # (Bc, Gp) f32
        gh = jnp.dot(h.astype(bf16), whh,
                     preferred_element_type=jnp.float32)        # (Bc, Gp) f32
        # PyTorch gate order r, z, n packed at column offsets 0 / Hk / 2*Hk.
        r = jax.nn.sigmoid(gi_t[:, 0:Hk] + gh[:, 0:Hk])
        z = jax.nn.sigmoid(gi_t[:, Hk:2 * Hk] + gh[:, Hk:2 * Hk])
        n = jnp.tanh(gi_t[:, 2 * Hk:3 * Hk]
                     + r * (gh[:, 2 * Hk:3 * Hk] + bhn))
        h_new = (1.0 - z) * n + z * h
        hrelu_ref[pl.ds(row, Bc), :] = jnp.maximum(h_new, 0.0)   # staged ReLU
        return h_new

    h0 = jnp.zeros((Bc, Hk), jnp.float32)
    jax.lax.fori_loop(0, S, step, h0, unroll=min(S, 8))

    # ---- Phase 3: output Linear for all timesteps (one lane-dense matmul). --
    out = jnp.dot(hrelu_ref[...].astype(bf16), wout_ref[...],
                  preferred_element_type=jnp.float32) + bout_ref[...]
    out_ref[...] = out.astype(out_ref.dtype)


def pack_gru_params(params):
    """One-time repack of PyTorch-layout GRU weights into the kernel layout."""
    f32, bf16 = jnp.float32, jnp.bfloat16
    w_ih = params["w_ih"].astype(f32)    # (3H, D)
    w_hh = params["w_hh"].astype(f32)    # (3H, H)
    b_ih = params["b_ih"].astype(f32)    # (3H,)
    b_hh = params["b_hh"].astype(f32)    # (3H,)
    w_out = params["w_out"].astype(f32)  # (O, H)
    b_out = params["b_out"].astype(f32)  # (O,)

    H = w_hh.shape[1]
    D = w_ih.shape[1]
    O = w_out.shape[0]
    Hk = _round_up(H, 8)                 # hidden dim padded to sublanes
    Gp = _round_up(3 * Hk, 128)          # packed gate width padded to lanes
    Op = _round_up(O, 128)               # lane-dense output stores

    def gate(a, g):                      # PyTorch gate order: r, z, n
        return a[g * H:(g + 1) * H]

    # W_ih^T / W_hh^T packed gate-by-gate into a single lane tile:
    # columns [g*Hk, g*Hk + H) hold gate g; everything else is zero padding.
    wih_t = jnp.zeros((D, Gp), f32)
    whh_t = jnp.zeros((Hk, Gp), f32)
    for g in range(3):
        c0 = g * Hk
        wih_t = wih_t.at[:, c0:c0 + H].set(gate(w_ih, g).T)
        whh_t = whh_t.at[0:H, c0:c0 + H].set(gate(w_hh, g).T)

    # Input-projection bias with the hidden-side r/z biases folded in; only
    # b_hn stays separate (it sits inside the r-gated term).
    bgi = jnp.zeros((1, Gp), f32)
    bgi = bgi.at[0, 0 * Hk:0 * Hk + H].set(gate(b_ih, 0) + gate(b_hh, 0))
    bgi = bgi.at[0, 1 * Hk:1 * Hk + H].set(gate(b_ih, 1) + gate(b_hh, 1))
    bgi = bgi.at[0, 2 * Hk:2 * Hk + H].set(gate(b_ih, 2))
    bhn = jnp.zeros((1, Hk), f32).at[0, 0:H].set(gate(b_hh, 2))

    wout_t = jnp.zeros((Hk, Op), f32).at[0:H, 0:O].set(w_out.T)
    bout = jnp.zeros((1, Op), f32).at[0, 0:O].set(b_out)

    return {
        "wih": wih_t.astype(bf16),
        "whh": whh_t.astype(bf16),
        "bgi": bgi,
        "bhn": bhn,
        "wout": wout_t.astype(bf16),
        "bout": bout,
    }


def gru_regression_forward(x, packed, *, output_dim, batch_chunk=128):
    """x: (seq_len, batch, input_dim) f32 -> (seq_len, batch, output_dim)."""
    S, B, D = x.shape
    wih, whh = packed["wih"], packed["whh"]
    bgi, bhn = packed["bgi"], packed["bhn"]
    wout, bout = packed["wout"], packed["bout"]
    Hk, Gp = whh.shape
    Op = wout.shape[1]

    # Batch chunking: each grid step runs the full recurrence for Bc sequences.
    # Chunks are independent -> "parallel" grid axis (v7x: both TensorCores).
    Bp = _round_up(B, 8)
    Bc = min(Bp, _round_up(batch_chunk, 8))
    NC = (Bp + Bc - 1) // Bc
    Bp = NC * Bc

    f32 = jnp.float32
    x_p = jnp.zeros((S, Bp, D), f32).at[:, 0:B, :].set(x.astype(f32))
    # chunk-major, then time, then batch-within-chunk -> (NC*S*Bc, D)
    x_p = x_p.reshape(S, NC, Bc, D).transpose(1, 0, 2, 3).reshape(NC * S * Bc, D)

    kernel = functools.partial(_gru_kernel, seq_len=S, batch_chunk=Bc)
    full = lambda a: pl.BlockSpec(a.shape, lambda c: (0, 0))

    out_pad = pl.pallas_call(
        kernel,
        out_shape=jax.ShapeDtypeStruct((NC * S * Bc, Op), f32),
        grid=(NC,),
        in_specs=[
            pl.BlockSpec((S * Bc, D), lambda c: (c, 0)),   # x, per batch chunk
            full(wih), full(whh), full(bgi), full(bhn), full(wout), full(bout),
        ],
        out_specs=pl.BlockSpec((S * Bc, Op), lambda c: (c, 0)),
        scratch_shapes=[
            pltpu.VMEM((S * Bc, Gp), f32),   # gi for all timesteps of a chunk
            pltpu.VMEM((S * Bc, Hk), f32),   # relu(h_t) for all timesteps
        ],
        compiler_params=pltpu.CompilerParams(
            dimension_semantics=("parallel",),
            vmem_limit_bytes=32 * 1024 * 1024,   # above v5e's 16 MiB default
        ),
    )(x_p, wih, whh, bgi, bhn, wout, bout)

    out = out_pad.reshape(NC, S, Bc, Op).transpose(1, 0, 2, 3).reshape(S, Bp, Op)
    return out[:, 0:B, 0:output_dim]


def _reference_forward(x, params):
    """Pure-JAX f32 reference matching PyTorch GRU -> ReLU -> Linear."""
    hp = jax.lax.Precision.HIGHEST
    H = params["w_hh"].shape[1]          # (3H, H) -> true hidden dim
    h0 = jnp.zeros((x.shape[1], H), jnp.float32)

    def step(h, x_t):
        gi = jnp.dot(x_t, params["w_ih"].T, precision=hp) + params["b_ih"]
        gh = jnp.dot(h, params["w_hh"].T, precision=hp) + params["b_hh"]
        i_r, i_z, i_n = jnp.split(gi, 3, axis=-1)
        h_r, h_z, h_n = jnp.split(gh, 3, axis=-1)
        r = jax.nn.sigmoid(i_r + h_r)
        z = jax.nn.sigmoid(i_z + h_z)
        n = jnp.tanh(i_n + r * h_n)
        h_new = (1.0 - z) * n + z * h
        return h_new, h_new

    _, hs = jax.lax.scan(step, h0, x)
    y = jnp.maximum(hs, 0.0)
    return jnp.dot(y, params["w_out"].T, precision=hp) + params["b_out"]


def init_params(key, input_dim, hidden_dim, output_dim):
    ks = jax.random.split(key, 6)
    s = 1.0 / jnp.sqrt(hidden_dim)
    return {
        "w_ih": jax.random.uniform(ks[0], (3 * hidden_dim, input_dim),
                                   jnp.float32, -s, s),
        "w_hh": jax.random.uniform(ks[1], (3 * hidden_dim, hidden_dim),
                                   jnp.float32, -s, s),
        "b_ih": jax.random.uniform(ks[2], (3 * hidden_dim,),
                                   jnp.float32, -s, s),
        "b_hh": jax.random.uniform(ks[3], (3 * hidden_dim,),
                                   jnp.float32, -s, s),
        "w_out": jax.random.uniform(ks[4], (output_dim, hidden_dim),
                                    jnp.float32, -s, s),
        "b_out": jax.random.uniform(ks[5], (output_dim,),
                                    jnp.float32, -s, s),
    }


if __name__ == "__main__":
    seq_len, batch, input_dim, hidden_dim, output_dim = 8, 2, 8, 32, 4

    key = jax.random.PRNGKey(0)
    k_x, k_p = jax.random.split(key)
    x = jax.random.normal(k_x, (seq_len, batch, input_dim), jnp.float32)
    params = init_params(k_p, input_dim, hidden_dim, output_dim)

    packed = pack_gru_params(params)     # one-time weight repacking (hoisted)
    fwd = jax.jit(functools.partial(gru_regression_forward,
                                    output_dim=output_dim))
    out = jax.block_until_ready(fwd(x, packed))

    ref = _reference_forward(x, params)
    assert out.shape == (seq_len, batch, output_dim)
    # Kernel matmuls use bf16 operands (single MXU pass, f32 accumulation);
    # the rounding compounds over the 8-step recurrence, so the tolerance is
    # looser than a pure-f32 comparison would allow.  Structural bugs would
    # produce O(0.1+) errors, far above this bound.
    assert bool(jnp.allclose(out, ref, atol=2e-2, rtol=2e-2)), \
        "mismatch vs reference"

    print("KERNEL_OK")
</pallas_src>

<mosaic_0001>
module attributes {stable_mosaic.version = 11 : i64} {
  func.func @_gru_kernel(%arg0: i32, %arg1: memref<64x8xf32, #tpu.memory_space<vmem>>, %arg2: memref<8x128xbf16, #tpu.memory_space<vmem>>, %arg3: memref<32x128xbf16, #tpu.memory_space<vmem>>, %arg4: memref<1x128xf32, #tpu.memory_space<vmem>>, %arg5: memref<1x32xf32, #tpu.memory_space<vmem>>, %arg6: memref<32x128xbf16, #tpu.memory_space<vmem>>, %arg7: memref<1x128xf32, #tpu.memory_space<vmem>>, %arg8: memref<64x128xf32, #tpu.memory_space<vmem>>, %arg9: memref<64x128xf32, #tpu.memory_space<vmem>>, %arg10: memref<64x32xf32, #tpu.memory_space<vmem>>) attributes {dimension_semantics = [#tpu.dimension_semantics<parallel>], iteration_bounds = array<i64: 1>, scalar_prefetch = 0 : i64, scratch_operands = 2 : i64, tpu.core_type = #tpu.core_type<tc>, window_params = [{transform_indices = @transform_0, window_bounds = array<i64: 64, 8>}, {pipeline_mode = #tpu.pipeline_mode<synchronous>, transform_indices = @transform_1, window_bounds = array<i64: 8, 128>}, {pipeline_mode = #tpu.pipeline_mode<synchronous>, transform_indices = @transform_2, window_bounds = array<i64: 32, 128>}, {pipeline_mode = #tpu.pipeline_mode<synchronous>, transform_indices = @transform_3, window_bounds = array<i64: 1, 128>}, {pipeline_mode = #tpu.pipeline_mode<synchronous>, transform_indices = @transform_4, window_bounds = array<i64: 1, 32>}, {pipeline_mode = #tpu.pipeline_mode<synchronous>, transform_indices = @transform_5, window_bounds = array<i64: 32, 128>}, {pipeline_mode = #tpu.pipeline_mode<synchronous>, transform_indices = @transform_6, window_bounds = array<i64: 1, 128>}, {transform_indices = @transform_7, window_bounds = array<i64: 64, 128>}]} {
    %c0 = arith.constant 0 : index
    %c0_0 = arith.constant 0 : index
    %0 = vector.load %arg1[%c0, %c0_0] : memref<64x8xf32, #tpu.memory_space<vmem>>, vector<64x8xf32>
    %1 = arith.truncf %0 : vector<64x8xf32> to vector<64x8xbf16>
    %c0_1 = arith.constant 0 : index
    %c0_2 = arith.constant 0 : index
    %2 = vector.load %arg2[%c0_1, %c0_2] : memref<8x128xbf16, #tpu.memory_space<vmem>>, vector<8x128xbf16>
    %cst = arith.constant dense<0.000000e+00> : vector<64x128xf32>
    %3 = tpu.matmul %1, %2, %cst {dimension_numbers = #tpu.dot_dimension_numbers<[1], [0], [0], [1], [0, 0, 1, 1], [], []>} : vector<64x8xbf16>, vector<8x128xbf16>, vector<64x128xf32> -> vector<64x128xf32>
    %c0_3 = arith.constant 0 : index
    %c0_4 = arith.constant 0 : index
    %4 = vector.load %arg4[%c0_3, %c0_4] : memref<1x128xf32, #tpu.memory_space<vmem>>, vector<1x128xf32>
    %5 = vector.broadcast %4 : vector<1x128xf32> to vector<64x128xf32>
    %6 = arith.addf %3, %5 : vector<64x128xf32>
    %c0_5 = arith.constant 0 : index
    %c0_6 = arith.constant 0 : index
    %7 = vector.load %arg9[%c0_5, %c0_6] : memref<64x128xf32, #tpu.memory_space<vmem>>, vector<64x128xf32>
    tpu.vector_store %arg9[%c0_5, %c0_6], %6 {strides = array<i32>} : memref<64x128xf32, #tpu.memory_space<vmem>>, vector<64x128xf32>,
    %c0_7 = arith.constant 0 : index
    %c0_8 = arith.constant 0 : index
    %8 = vector.load %arg3[%c0_7, %c0_8] : memref<32x128xbf16, #tpu.memory_space<vmem>>, vector<32x128xbf16>
    %c0_9 = arith.constant 0 : index
    %c0_10 = arith.constant 0 : index
    %9 = vector.load %arg5[%c0_9, %c0_10] : memref<1x32xf32, #tpu.memory_space<vmem>>, vector<1x32xf32>
    %cst_11 = arith.constant 0.000000e+00 : f32
    %10 = vector.broadcast %cst_11 : f32 to vector<8x32xf32>
    %c0_i32 = arith.constant 0 : i32
    %c8_i32 = arith.constant 8 : i32
    %11 = arith.muli %c0_i32, %c8_i32 : i32
    %12 = arith.index_cast %11 : i32 to index
    %c0_12 = arith.constant 0 : index
    %13 = vector.load %arg9[%12, %c0_12] : memref<64x128xf32, #tpu.memory_space<vmem>>, vector<8x128xf32>
    %14 = arith.truncf %10 : vector<8x32xf32> to vector<8x32xbf16>
    %cst_13 = arith.constant dense<0.000000e+00> : vector<8x128xf32>
    %15 = tpu.matmul %14, %8, %cst_13 {dimension_numbers = #tpu.dot_dimension_numbers<[1], [0], [0], [1], [0, 0, 1, 1], [], []>} : vector<8x32xbf16>, vector<32x128xbf16>, vector<8x128xf32> -> vector<8x128xf32>
    %16 = vector.extract_strided_slice %13 {offsets = [0, 0], sizes = [8, 32], strides = [1, 1]} : vector<8x128xf32> to vector<8x32xf32>
    %17 = vector.extract_strided_slice %15 {offsets = [0, 0], sizes = [8, 32], strides = [1, 1]} : vector<8x128xf32> to vector<8x32xf32>
    %18 = arith.addf %16, %17 : vector<8x32xf32>
    %19 = arith.negf %18 : vector<8x32xf32>
    %20 = math.exp %19 : vector<8x32xf32>
    %cst_14 = arith.constant 1.000000e+00 : f32
    %21 = vector.broadcast %cst_14 : f32 to vector<8x32xf32>
    %22 = arith.addf %21, %20 : vector<8x32xf32>
    %23 = arith.divf %21, %22 : vector<8x32xf32>
    %24 = vector.extract_strided_slice %13 {offsets = [0, 32], sizes = [8, 32], strides = [1, 1]} : vector<8x128xf32> to vector<8x32xf32>
    %25 = vector.extract_strided_slice %15 {offsets = [0, 32], sizes = [8, 32], strides = [1, 1]} : vector<8x128xf32> to vector<8x32xf32>
    %26 = arith.addf %24, %25 : vector<8x32xf32>
    %27 = arith.negf %26 : vector<8x32xf32>
    %28 = math.exp %27 : vector<8x32xf32>
    %cst_15 = arith.constant 1.000000e+00 : f32
    %29 = vector.broadcast %cst_15 : f32 to vector<8x32xf32>
    %30 = arith.addf %29, %28 : vector<8x32xf32>
    %31 = arith.divf %29, %30 : vector<8x32xf32>
    %32 = vector.extract_strided_slice %13 {offsets = [0, 64], sizes = [8, 32], strides = [1, 1]} : vector<8x128xf32> to vector<8x32xf32>
    %33 = vector.extract_strided_slice %15 {offsets = [0, 64], sizes = [8, 32], strides = [1, 1]} : vector<8x128xf32> to vector<8x32xf32>
    %34 = vector.broadcast %9 : vector<1x32xf32> to vector<8x32xf32>
    %35 = arith.addf %33, %34 : vector<8x32xf32>
    %36 = arith.mulf %23, %35 : vector<8x32xf32>
    %37 = arith.addf %32, %36 : vector<8x32xf32>
    %38 = math.tanh %37 : vector<8x32xf32>
    %cst_16 = arith.constant 1.000000e+00 : f32
    %39 = vector.broadcast %cst_16 : f32 to vector<8x32xf32>
    %40 = arith.subf %39, %31 : vector<8x32xf32>
    %41 = arith.mulf %40, %38 : vector<8x32xf32>
    %42 = arith.mulf %31, %10 : vector<8x32xf32>
    %43 = arith.addf %41, %42 : vector<8x32xf32>
    %cst_17 = arith.constant 0.000000e+00 : f32
    %44 = vector.broadcast %cst_17 : f32 to vector<8x32xf32>
    %45 = arith.maximumf %43, %44 : vector<8x32xf32>
    %46 = arith.index_cast %11 : i32 to index
    %c0_18 = arith.constant 0 : index
    %47 = vector.load %arg10[%46, %c0_18] : memref<64x32xf32, #tpu.memory_space<vmem>>, vector<8x32xf32>
    tpu.vector_store %arg10[%46, %c0_18], %45 {strides = array<i32>} : memref<64x32xf32, #tpu.memory_space<vmem>>, vector<8x32xf32>,
    %c1_i32 = arith.constant 1 : i32
    %c8_i32_19 = arith.constant 8 : i32
    %48 = arith.muli %c1_i32, %c8_i32_19 : i32
    %49 = arith.index_cast %48 : i32 to index
    %c0_20 = arith.constant 0 : index
    %50 = vector.load %arg9[%49, %c0_20] : memref<64x128xf32, #tpu.memory_space<vmem>>, vector<8x128xf32>
    %51 = arith.truncf %43 : vector<8x32xf32> to vector<8x32xbf16>
    %cst_21 = arith.constant dense<0.000000e+00> : vector<8x128xf32>
    %52 = tpu.matmul %51, %8, %cst_21 {dimension_numbers = #tpu.dot_dimension_numbers<[1], [0], [0], [1], [0, 0, 1, 1], [], []>} : vector<8x32xbf16>, vector<32x128xbf16>, vector<8x128xf32> -> vector<8x128xf32>
    %53 = vector.extract_strided_slice %50 {offsets = [0, 0], sizes = [8, 32], strides = [1, 1]} : vector<8x128xf32> to vector<8x32xf32>
    %54 = vector.extract_strided_slice %52 {offsets = [0, 0], sizes = [8, 32], strides = [1, 1]} : vector<8x128xf32> to vector<8x32xf32>
    %55 = arith.addf %53, %54 : vector<8x32xf32>
    %56 = arith.negf %55 : vector<8x32xf32>
    %57 = math.exp %56 : vector<8x32xf32>
    %cst_22 = arith.constant 1.000000e+00 : f32
    %58 = vector.broadcast %cst_22 : f32 to vector<8x32xf32>
    %59 = arith.addf %58, %57 : vector<8x32xf32>
    %60 = arith.divf %58, %59 : vector<8x32xf32>
    %61 = vector.extract_strided_slice %50 {offsets = [0, 32], sizes = [8, 32], strides = [1, 1]} : vector<8x128xf32> to vector<8x32xf32>
    %62 = vector.extract_strided_slice %52 {offsets = [0, 32], sizes = [8, 32], strides = [1, 1]} : vector<8x128xf32> to vector<8x32xf32>
    %63 = arith.addf %61, %62 : vector<8x32xf32>
    %64 = arith.negf %63 : vector<8x32xf32>
    %65 = math.exp %64 : vector<8x32xf32>
    %cst_23 = arith.constant 1.000000e+00 : f32
    %66 = vector.broadcast %cst_23 : f32 to vector<8x32xf32>
    %67 = arith.addf %66, %65 : vector<8x32xf32>
    %68 = arith.divf %66, %67 : vector<8x32xf32>
    %69 = vector.extract_strided_slice %50 {offsets = [0, 64], sizes = [8, 32], strides = [1, 1]} : vector<8x128xf32> to vector<8x32xf32>
    %70 = vector.extract_strided_slice %52 {offsets = [0, 64], sizes = [8, 32], strides = [1, 1]} : vector<8x128xf32> to vector<8x32xf32>
    %71 = vector.broadcast %9 : vector<1x32xf32> to vector<8x32xf32>
    %72 = arith.addf %70, %71 : vector<8x32xf32>
    %73 = arith.mulf %60, %72 : vector<8x32xf32>
    %74 = arith.addf %69, %73 : vector<8x32xf32>
    %75 = math.tanh %74 : vector<8x32xf32>
    %cst_24 = arith.constant 1.000000e+00 : f32
    %76 = vector.broadcast %cst_24 : f32 to vector<8x32xf32>
    %77 = arith.subf %76, %68 : vector<8x32xf32>
    %78 = arith.mulf %77, %75 : vector<8x32xf32>
    %79 = arith.mulf %68, %43 : vector<8x32xf32>
    %80 = arith.addf %78, %79 : vector<8x32xf32>
    %cst_25 = arith.constant 0.000000e+00 : f32
    %81 = vector.broadcast %cst_25 : f32 to vector<8x32xf32>
    %82 = arith.maximumf %80, %81 : vector<8x32xf32>
    %83 = arith.index_cast %48 : i32 to index
    %c0_26 = arith.constant 0 : index
    %84 = vector.load %arg10[%83, %c0_26] : memref<64x32xf32, #tpu.memory_space<vmem>>, vector<8x32xf32>
    tpu.vector_store %arg10[%83, %c0_26], %82 {strides = array<i32>} : memref<64x32xf32, #tpu.memory_space<vmem>>, vector<8x32xf32>,
    %c2_i32 = arith.constant 2 : i32
    %c8_i32_27 = arith.constant 8 : i32
    %85 = arith.muli %c2_i32, %c8_i32_27 : i32
    %86 = arith.index_cast %85 : i32 to index
    %c0_28 = arith.constant 0 : index
    %87 = vector.load %arg9[%86, %c0_28] : memref<64x128xf32, #tpu.memory_space<vmem>>, vector<8x128xf32>
    %88 = arith.truncf %80 : vector<8x32xf32> to vector<8x32xbf16>
    %cst_29 = arith.constant dense<0.000000e+00> : vector<8x128xf32>
    %89 = tpu.matmul %88, %8, %cst_29 {dimension_numbers = #tpu.dot_dimension_numbers<[1], [0], [0], [1], [0, 0, 1, 1], [], []>} : vector<8x32xbf16>, vector<32x128xbf16>, vector<8x128xf32> -> vector<8x128xf32>
    %90 = vector.extract_strided_slice %87 {offsets = [0, 0], sizes = [8, 32], strides = [1, 1]} : vector<8x128xf32> to vector<8x32xf32>
    %91 = vector.extract_strided_slice %89 {offsets = [0, 0], sizes = [8, 32], strides = [1, 1]} : vector<8x128xf32> to vector<8x32xf32>
    %92 = arith.addf %90, %91 : vector<8x32xf32>
    %93 = arith.negf %92 : vector<8x32xf32>
    %94 = math.exp %93 : vector<8x32xf32>
    %cst_30 = arith.constant 1.000000e+00 : f32
    %95 = vector.broadcast %cst_30 : f32 to vector<8x32xf32>
    %96 = arith.addf %95, %94 : vector<8x32xf32>
    %97 = arith.divf %95, %96 : vector<8x32xf32>
    %98 = vector.extract_strided_slice %87 {offsets = [0, 32], sizes = [8, 32], strides = [1, 1]} : vector<8x128xf32> to vector<8x32xf32>
    %99 = vector.extract_strided_slice %89 {offsets = [0, 32], sizes = [8, 32], strides = [1, 1]} : vector<8x128xf32> to vector<8x32xf32>
    %100 = arith.addf %98, %99 : vector<8x32xf32>
    %101 = arith.negf %100 : vector<8x32xf32>
    %102 = math.exp %101 : vector<8x32xf32>
    %cst_31 = arith.constant 1.000000e+00 : f32
    %103 = vector.broadcast %cst_31 : f32 to vector<8x32xf32>
    %104 = arith.addf %103, %102 : vector<8x32xf32>
    %105 = arith.divf %103, %104 : vector<8x32xf32>
    %106 = vector.extract_strided_slice %87 {offsets = [0, 64], sizes = [8, 32], strides = [1, 1]} : vector<8x128xf32> to vector<8x32xf32>
    %107 = vector.extract_strided_slice %89 {offsets = [0, 64], sizes = [8, 32], strides = [1, 1]} : vector<8x128xf32> to vector<8x32xf32>
    %108 = vector.broadcast %9 : vector<1x32xf32> to vector<8x32xf32>
    %109 = arith.addf %107, %108 : vector<8x32xf32>
    %110 = arith.mulf %97, %109 : vector<8x32xf32>
    %111 = arith.addf %106, %110 : vector<8x32xf32>
    %112 = math.tanh %111 : vector<8x32xf32>
    %cst_32 = arith.constant 1.000000e+00 : f32
    %113 = vector.broadcast %cst_32 : f32 to vector<8x32xf32>
    %114 = arith.subf %113, %105 : vector<8x32xf32>
    %115 = arith.mulf %114, %112 : vector<8x32xf32>
    %116 = arith.mulf %105, %80 : vector<8x32xf32>
    %117 = arith.addf %115, %116 : vector<8x32xf32>
    %cst_33 = arith.constant 0.000000e+00 : f32
    %118 = vector.broadcast %cst_33 : f32 to vector<8x32xf32>
    %119 = arith.maximumf %117, %118 : vector<8x32xf32>
    %120 = arith.index_cast %85 : i32 to index
    %c0_34 = arith.constant 0 : index
    %121 = vector.load %arg10[%120, %c0_34] : memref<64x32xf32, #tpu.memory_space<vmem>>, vector<8x32xf32>
    tpu.vector_store %arg10[%120, %c0_34], %119 {strides = array<i32>} : memref<64x32xf32, #tpu.memory_space<vmem>>, vector<8x32xf32>,
    %c3_i32 = arith.constant 3 : i32
    %c8_i32_35 = arith.constant 8 : i32
    %122 = arith.muli %c3_i32, %c8_i32_35 : i32
    %123 = arith.index_cast %122 : i32 to index
    %c0_36 = arith.constant 0 : index
    %124 = vector.load %arg9[%123, %c0_36] : memref<64x128xf32, #tpu.memory_space<vmem>>, vector<8x128xf32>
    %125 = arith.truncf %117 : vector<8x32xf32> to vector<8x32xbf16>
    %cst_37 = arith.constant dense<0.000000e+00> : vector<8x128xf32>
    %126 = tpu.matmul %125, %8, %cst_37 {dimension_numbers = #tpu.dot_dimension_numbers<[1], [0], [0], [1], [0, 0, 1, 1], [], []>} : vector<8x32xbf16>, vector<32x128xbf16>, vector<8x128xf32> -> vector<8x128xf32>
    %127 = vector.extract_strided_slice %124 {offsets = [0, 0], sizes = [8, 32], strides = [1, 1]} : vector<8x128xf32> to vector<8x32xf32>
    %128 = vector.extract_strided_slice %126 {offsets = [0, 0], sizes = [8, 32], strides = [1, 1]} : vector<8x128xf32> to vector<8x32xf32>
    %129 = arith.addf %127, %128 : vector<8x32xf32>
    %130 = arith.negf %129 : vector<8x32xf32>
    %131 = math.exp %130 : vector<8x32xf32>
    %cst_38 = arith.constant 1.000000e+00 : f32
    %132 = vector.broadcast %cst_38 : f32 to vector<8x32xf32>
    %133 = arith.addf %132, %131 : vector<8x32xf32>
    %134 = arith.divf %132, %133 : vector<8x32xf32>
    %135 = vector.extract_strided_slice %124 {offsets = [0, 32], sizes = [8, 32], strides = [1, 1]} : vector<8x128xf32> to vector<8x32xf32>
    %136 = vector.extract_strided_slice %126 {offsets = [0, 32], sizes = [8, 32], strides = [1, 1]} : vector<8x128xf32> to vector<8x32xf32>
    %137 = arith.addf %135, %136 : vector<8x32xf32>
    %138 = arith.negf %137 : vector<8x32xf32>
    %139 = math.exp %138 : vector<8x32xf32>
    %cst_39 = arith.constant 1.000000e+00 : f32
    %140 = vector.broadcast %cst_39 : f32 to vector<8x32xf32>
    %141 = arith.addf %140, %139 : vector<8x32xf32>
    %142 = arith.divf %140, %141 : vector<8x32xf32>
    %143 = vector.extract_strided_slice %124 {offsets = [0, 64], sizes = [8, 32], strides = [1, 1]} : vector<8x128xf32> to vector<8x32xf32>
    %144 = vector.extract_strided_slice %126 {offsets = [0, 64], sizes = [8, 32], strides = [1, 1]} : vector<8x128xf32> to vector<8x32xf32>
    %145 = vector.broadcast %9 : vector<1x32xf32> to vector<8x32xf32>
    %146 = arith.addf %144, %145 : vector<8x32xf32>
    %147 = arith.mulf %134, %146 : vector<8x32xf32>
    %148 = arith.addf %143, %147 : vector<8x32xf32>
    %149 = math.tanh %148 : vector<8x32xf32>
    %cst_40 = arith.constant 1.000000e+00 : f32
    %150 = vector.broadcast %cst_40 : f32 to vector<8x32xf32>
    %151 = arith.subf %150, %142 : vector<8x32xf32>
    %152 = arith.mulf %151, %149 : vector<8x32xf32>
    %153 = arith.mulf %142, %117 : vector<8x32xf32>
    %154 = arith.addf %152, %153 : vector<8x32xf32>
    %cst_41 = arith.constant 0.000000e+00 : f32
    %155 = vector.broadcast %cst_41 : f32 to vector<8x32xf32>
    %156 = arith.maximumf %154, %155 : vector<8x32xf32>
    %157 = arith.index_cast %122 : i32 to index
    %c0_42 = arith.constant 0 : index
    %158 = vector.load %arg10[%157, %c0_42] : memref<64x32xf32, #tpu.memory_space<vmem>>, vector<8x32xf32>
    tpu.vector_store %arg10[%157, %c0_42], %156 {strides = array<i32>} : memref<64x32xf32, #tpu.memory_space<vmem>>, vector<8x32xf32>,
    %c4_i32 = arith.constant 4 : i32
    %c8_i32_43 = arith.constant 8 : i32
    %159 = arith.muli %c4_i32, %c8_i32_43 : i32
    %160 = arith.index_cast %159 : i32 to index
    %c0_44 = arith.constant 0 : index
    %161 = vector.load %arg9[%160, %c0_44] : memref<64x128xf32, #tpu.memory_space<vmem>>, vector<8x128xf32>
    %162 = arith.truncf %154 : vector<8x32xf32> to vector<8x32xbf16>
    %cst_45 = arith.constant dense<0.000000e+00> : vector<8x128xf32>
    %163 = tpu.matmul %162, %8, %cst_45 {dimension_numbers = #tpu.dot_dimension_numbers<[1], [0], [0], [1], [0, 0, 1, 1], [], []>} : vector<8x32xbf16>, vector<32x128xbf16>, vector<8x128xf32> -> vector<8x128xf32>
    %164 = vector.extract_strided_slice %161 {offsets = [0, 0], sizes = [8, 32], strides = [1, 1]} : vector<8x128xf32> to vector<8x32xf32>
    %165 = vector.extract_strided_slice %163 {offsets = [0, 0], sizes = [8, 32], strides = [1, 1]} : vector<8x128xf32> to vector<8x32xf32>
    %166 = arith.addf %164, %165 : vector<8x32xf32>
    %167 = arith.negf %166 : vector<8x32xf32>
    %168 = math.exp %167 : vector<8x32xf32>
    %cst_46 = arith.constant 1.000000e+00 : f32
    %169 = vector.broadcast %cst_46 : f32 to vector<8x32xf32>
    %170 = arith.addf %169, %168 : vector<8x32xf32>
    %171 = arith.divf %169, %170 : vector<8x32xf32>
    %172 = vector.extract_strided_slice %161 {offsets = [0, 32], sizes = [8, 32], strides = [1, 1]} : vector<8x128xf32> to vector<8x32xf32>
    %173 = vector.extract_strided_slice %163 {offsets = [0, 32], sizes = [8, 32], strides = [1, 1]} : vector<8x128xf32> to vector<8x32xf32>
    %174 = arith.addf %172, %173 : vector<8x32xf32>
    %175 = arith.negf %174 : vector<8x32xf32>
    %176 = math.exp %175 : vector<8x32xf32>
    %cst_47 = arith.constant 1.000000e+00 : f32
    %177 = vector.broadcast %cst_47 : f32 to vector<8x32xf32>
    %178 = arith.addf %177, %176 : vector<8x32xf32>
    %179 = arith.divf %177, %178 : vector<8x32xf32>
    %180 = vector.extract_strided_slice %161 {offsets = [0, 64], sizes = [8, 32], strides = [1, 1]} : vector<8x128xf32> to vector<8x32xf32>
    %181 = vector.extract_strided_slice %163 {offsets = [0, 64], sizes = [8, 32], strides = [1, 1]} : vector<8x128xf32> to vector<8x32xf32>
    %182 = vector.broadcast %9 : vector<1x32xf32> to vector<8x32xf32>
    %183 = arith.addf %181, %182 : vector<8x32xf32>
    %184 = arith.mulf %171, %183 : vector<8x32xf32>
    %185 = arith.addf %180, %184 : vector<8x32xf32>
    %186 = math.tanh %185 : vector<8x32xf32>
    %cst_48 = arith.constant 1.000000e+00 : f32
    %187 = vector.broadcast %cst_48 : f32 to vector<8x32xf32>
    %188 = arith.subf %187, %179 : vector<8x32xf32>
    %189 = arith.mulf %188, %186 : vector<8x32xf32>
    %190 = arith.mulf %179, %154 : vector<8x32xf32>
    %191 = arith.addf %189, %190 : vector<8x32xf32>
    %cst_49 = arith.constant 0.000000e+00 : f32
    %192 = vector.broadcast %cst_49 : f32 to vector<8x32xf32>
    %193 = arith.maximumf %191, %192 : vector<8x32xf32>
    %194 = arith.index_cast %159 : i32 to index
    %c0_50 = arith.constant 0 : index
    %195 = vector.load %arg10[%194, %c0_50] : memref<64x32xf32, #tpu.memory_space<vmem>>, vector<8x32xf32>
    tpu.vector_store %arg10[%194, %c0_50], %193 {strides = array<i32>} : memref<64x32xf32, #tpu.memory_space<vmem>>, vector<8x32xf32>,
    %c5_i32 = arith.constant 5 : i32
    %c8_i32_51 = arith.constant 8 : i32
    %196 = arith.muli %c5_i32, %c8_i32_51 : i32
    %197 = arith.index_cast %196 : i32 to index
    %c0_52 = arith.constant 0 : index
    %198 = vector.load %arg9[%197, %c0_52] : memref<64x128xf32, #tpu.memory_space<vmem>>, vector<8x128xf32>
    %199 = arith.truncf %191 : vector<8x32xf32> to vector<8x32xbf16>
    %cst_53 = arith.constant dense<0.000000e+00> : vector<8x128xf32>
    %200 = tpu.matmul %199, %8, %cst_53 {dimension_numbers = #tpu.dot_dimension_numbers<[1], [0], [0], [1], [0, 0, 1, 1], [], []>} : vector<8x32xbf16>, vector<32x128xbf16>, vector<8x128xf32> -> vector<8x128xf32>
    %201 = vector.extract_strided_slice %198 {offsets = [0, 0], sizes = [8, 32], strides = [1, 1]} : vector<8x128xf32> to vector<8x32xf32>
    %202 = vector.extract_strided_slice %200 {offsets = [0, 0], sizes = [8, 32], strides = [1, 1]} : vector<8x128xf32> to vector<8x32xf32>
    %203 = arith.addf %201, %202 : vector<8x32xf32>
    %204 = arith.negf %203 : vector<8x32xf32>
    %205 = math.exp %204 : vector<8x32xf32>
    %cst_54 = arith.constant 1.000000e+00 : f32
    %206 = vector.broadcast %cst_54 : f32 to vector<8x32xf32>
    %207 = arith.addf %206, %205 : vector<8x32xf32>
    %208 = arith.divf %206, %207 : vector<8x32xf32>
    %209 = vector.extract_strided_slice %198 {offsets = [0, 32], sizes = [8, 32], strides = [1, 1]} : vector<8x128xf32> to vector<8x32xf32>
    %210 = vector.extract_strided_slice %200 {offsets = [0, 32], sizes = [8, 32], strides = [1, 1]} : vector<8x128xf32> to vector<8x32xf32>
    %211 = arith.addf %209, %210 : vector<8x32xf32>
    %212 = arith.negf %211 : vector<8x32xf32>
    %213 = math.exp %212 : vector<8x32xf32>
    %cst_55 = arith.constant 1.000000e+00 : f32
    %214 = vector.broadcast %cst_55 : f32 to vector<8x32xf32>
    %215 = arith.addf %214, %213 : vector<8x32xf32>
    %216 = arith.divf %214, %215 : vector<8x32xf32>
    %217 = vector.extract_strided_slice %198 {offsets = [0, 64], sizes = [8, 32], strides = [1, 1]} : vector<8x128xf32> to vector<8x32xf32>
    %218 = vector.extract_strided_slice %200 {offsets = [0, 64], sizes = [8, 32], strides = [1, 1]} : vector<8x128xf32> to vector<8x32xf32>
    %219 = vector.broadcast %9 : vector<1x32xf32> to vector<8x32xf32>
    %220 = arith.addf %218, %219 : vector<8x32xf32>
    %221 = arith.mulf %208, %220 : vector<8x32xf32>
    %222 = arith.addf %217, %221 : vector<8x32xf32>
    %223 = math.tanh %222 : vector<8x32xf32>
    %cst_56 = arith.constant 1.000000e+00 : f32
    %224 = vector.broadcast %cst_56 : f32 to vector<8x32xf32>
    %225 = arith.subf %224, %216 : vector<8x32xf32>
    %226 = arith.mulf %225, %223 : vector<8x32xf32>
    %227 = arith.mulf %216, %191 : vector<8x32xf32>
    %228 = arith.addf %226, %227 : vector<8x32xf32>
    %cst_57 = arith.constant 0.000000e+00 : f32
    %229 = vector.broadcast %cst_57 : f32 to vector<8x32xf32>
    %230 = arith.maximumf %228, %229 : vector<8x32xf32>
    %231 = arith.index_cast %196 : i32 to index
    %c0_58 = arith.constant 0 : index
    %232 = vector.load %arg10[%231, %c0_58] : memref<64x32xf32, #tpu.memory_space<vmem>>, vector<8x32xf32>
    tpu.vector_store %arg10[%231, %c0_58], %230 {strides = array<i32>} : memref<64x32xf32, #tpu.memory_space<vmem>>, vector<8x32xf32>,
    %c6_i32 = arith.constant 6 : i32
    %c8_i32_59 = arith.constant 8 : i32
    %233 = arith.muli %c6_i32, %c8_i32_59 : i32
    %234 = arith.index_cast %233 : i32 to index
    %c0_60 = arith.constant 0 : index
    %235 = vector.load %arg9[%234, %c0_60] : memref<64x128xf32, #tpu.memory_space<vmem>>, vector<8x128xf32>
    %236 = arith.truncf %228 : vector<8x32xf32> to vector<8x32xbf16>
    %cst_61 = arith.constant dense<0.000000e+00> : vector<8x128xf32>
    %237 = tpu.matmul %236, %8, %cst_61 {dimension_numbers = #tpu.dot_dimension_numbers<[1], [0], [0], [1], [0, 0, 1, 1], [], []>} : vector<8x32xbf16>, vector<32x128xbf16>, vector<8x128xf32> -> vector<8x128xf32>
    %238 = vector.extract_strided_slice %235 {offsets = [0, 0], sizes = [8, 32], strides = [1, 1]} : vector<8x128xf32> to vector<8x32xf32>
    %239 = vector.extract_strided_slice %237 {offsets = [0, 0], sizes = [8, 32], strides = [1, 1]} : vector<8x128xf32> to vector<8x32xf32>
    %240 = arith.addf %238, %239 : vector<8x32xf32>
    %241 = arith.negf %240 : vector<8x32xf32>
    %242 = math.exp %241 : vector<8x32xf32>
    %cst_62 = arith.constant 1.000000e+00 : f32
    %243 = vector.broadcast %cst_62 : f32 to vector<8x32xf32>
    %244 = arith.addf %243, %242 : vector<8x32xf32>
    %245 = arith.divf %243, %244 : vector<8x32xf32>
    %246 = vector.extract_strided_slice %235 {offsets = [0, 32], sizes = [8, 32], strides = [1, 1]} : vector<8x128xf32> to vector<8x32xf32>
    %247 = vector.extract_strided_slice %237 {offsets = [0, 32], sizes = [8, 32], strides = [1, 1]} : vector<8x128xf32> to vector<8x32xf32>
    %248 = arith.addf %246, %247 : vector<8x32xf32>
    %249 = arith.negf %248 : vector<8x32xf32>
    %250 = math.exp %249 : vector<8x32xf32>
    %cst_63 = arith.constant 1.000000e+00 : f32
    %251 = vector.broadcast %cst_63 : f32 to vector<8x32xf32>
    %252 = arith.addf %251, %250 : vector<8x32xf32>
    %253 = arith.divf %251, %252 : vector<8x32xf32>
    %254 = vector.extract_strided_slice %235 {offsets = [0, 64], sizes = [8, 32], strides = [1, 1]} : vector<8x128xf32> to vector<8x32xf32>
    %255 = vector.extract_strided_slice %237 {offsets = [0, 64], sizes = [8, 32], strides = [1, 1]} : vector<8x128xf32> to vector<8x32xf32>
    %256 = vector.broadcast %9 : vector<1x32xf32> to vector<8x32xf32>
    %257 = arith.addf %255, %256 : vector<8x32xf32>
    %258 = arith.mulf %245, %257 : vector<8x32xf32>
    %259 = arith.addf %254, %258 : vector<8x32xf32>
    %260 = math.tanh %259 : vector<8x32xf32>
    %cst_64 = arith.constant 1.000000e+00 : f32
    %261 = vector.broadcast %cst_64 : f32 to vector<8x32xf32>
    %262 = arith.subf %261, %253 : vector<8x32xf32>
    %263 = arith.mulf %262, %260 : vector<8x32xf32>
    %264 = arith.mulf %253, %228 : vector<8x32xf32>
    %265 = arith.addf %263, %264 : vector<8x32xf32>
    %cst_65 = arith.constant 0.000000e+00 : f32
    %266 = vector.broadcast %cst_65 : f32 to vector<8x32xf32>
    %267 = arith.maximumf %265, %266 : vector<8x32xf32>
    %268 = arith.index_cast %233 : i32 to index
    %c0_66 = arith.constant 0 : index
    %269 = vector.load %arg10[%268, %c0_66] : memref<64x32xf32, #tpu.memory_space<vmem>>, vector<8x32xf32>
    tpu.vector_store %arg10[%268, %c0_66], %267 {strides = array<i32>} : memref<64x32xf32, #tpu.memory_space<vmem>>, vector<8x32xf32>,
    %c7_i32 = arith.constant 7 : i32
    %c8_i32_67 = arith.constant 8 : i32
    %270 = arith.muli %c7_i32, %c8_i32_67 : i32
    %271 = arith.index_cast %270 : i32 to index
    %c0_68 = arith.constant 0 : index
    %272 = vector.load %arg9[%271, %c0_68] : memref<64x128xf32, #tpu.memory_space<vmem>>, vector<8x128xf32>
    %273 = arith.truncf %265 : vector<8x32xf32> to vector<8x32xbf16>
    %cst_69 = arith.constant dense<0.000000e+00> : vector<8x128xf32>
    %274 = tpu.matmul %273, %8, %cst_69 {dimension_numbers = #tpu.dot_dimension_numbers<[1], [0], [0], [1], [0, 0, 1, 1], [], []>} : vector<8x32xbf16>, vector<32x128xbf16>, vector<8x128xf32> -> vector<8x128xf32>
    %275 = vector.extract_strided_slice %272 {offsets = [0, 0], sizes = [8, 32], strides = [1, 1]} : vector<8x128xf32> to vector<8x32xf32>
    %276 = vector.extract_strided_slice %274 {offsets = [0, 0], sizes = [8, 32], strides = [1, 1]} : vector<8x128xf32> to vector<8x32xf32>
    %277 = arith.addf %275, %276 : vector<8x32xf32>
    %278 = arith.negf %277 : vector<8x32xf32>
    %279 = math.exp %278 : vector<8x32xf32>
    %cst_70 = arith.constant 1.000000e+00 : f32
    %280 = vector.broadcast %cst_70 : f32 to vector<8x32xf32>
    %281 = arith.addf %280, %279 : vector<8x32xf32>
    %282 = arith.divf %280, %281 : vector<8x32xf32>
    %283 = vector.extract_strided_slice %272 {offsets = [0, 32], sizes = [8, 32], strides = [1, 1]} : vector<8x128xf32> to vector<8x32xf32>
    %284 = vector.extract_strided_slice %274 {offsets = [0, 32], sizes = [8, 32], strides = [1, 1]} : vector<8x128xf32> to vector<8x32xf32>
    %285 = arith.addf %283, %284 : vector<8x32xf32>
    %286 = arith.negf %285 : vector<8x32xf32>
    %287 = math.exp %286 : vector<8x32xf32>
    %cst_71 = arith.constant 1.000000e+00 : f32
    %288 = vector.broadcast %cst_71 : f32 to vector<8x32xf32>
    %289 = arith.addf %288, %287 : vector<8x32xf32>
    %290 = arith.divf %288, %289 : vector<8x32xf32>
    %291 = vector.extract_strided_slice %272 {offsets = [0, 64], sizes = [8, 32], strides = [1, 1]} : vector<8x128xf32> to vector<8x32xf32>
    %292 = vector.extract_strided_slice %274 {offsets = [0, 64], sizes = [8, 32], strides = [1, 1]} : vector<8x128xf32> to vector<8x32xf32>
    %293 = vector.broadcast %9 : vector<1x32xf32> to vector<8x32xf32>
    %294 = arith.addf %292, %293 : vector<8x32xf32>
    %295 = arith.mulf %282, %294 : vector<8x32xf32>
    %296 = arith.addf %291, %295 : vector<8x32xf32>
    %297 = math.tanh %296 : vector<8x32xf32>
    %cst_72 = arith.constant 1.000000e+00 : f32
    %298 = vector.broadcast %cst_72 : f32 to vector<8x32xf32>
    %299 = arith.subf %298, %290 : vector<8x32xf32>
    %300 = arith.mulf %299, %297 : vector<8x32xf32>
    %301 = arith.mulf %290, %265 : vector<8x32xf32>
    %302 = arith.addf %300, %301 : vector<8x32xf32>
    %cst_73 = arith.constant 0.000000e+00 : f32
    %303 = vector.broadcast %cst_73 : f32 to vector<8x32xf32>
    %304 = arith.maximumf %302, %303 : vector<8x32xf32>
    %305 = arith.index_cast %270 : i32 to index
    %c0_74 = arith.constant 0 : index
    %306 = vector.load %arg10[%305, %c0_74] : memref<64x32xf32, #tpu.memory_space<vmem>>, vector<8x32xf32>
    tpu.vector_store %arg10[%305, %c0_74], %304 {strides = array<i32>} : memref<64x32xf32, #tpu.memory_space<vmem>>, vector<8x32xf32>,
    %c8_i32_75 = arith.constant 8 : i32
    %c0_76 = arith.constant 0 : index
    %c0_77 = arith.constant 0 : index
    %307 = vector.load %arg10[%c0_76, %c0_77] : memref<64x32xf32, #tpu.memory_space<vmem>>, vector<64x32xf32>
    %308 = arith.truncf %307 : vector<64x32xf32> to vector<64x32xbf16>
    %c0_78 = arith.constant 0 : index
    %c0_79 = arith.constant 0 : index
    %309 = vector.load %arg6[%c0_78, %c0_79] : memref<32x128xbf16, #tpu.memory_space<vmem>>, vector<32x128xbf16>
    %cst_80 = arith.constant dense<0.000000e+00> : vector<64x128xf32>
    %310 = tpu.matmul %308, %309, %cst_80 {dimension_numbers = #tpu.dot_dimension_numbers<[1], [0], [0], [1], [0, 0, 1, 1], [], []>} : vector<64x32xbf16>, vector<32x128xbf16>, vector<64x128xf32> -> vector<64x128xf32>
    %c0_81 = arith.constant 0 : index
    %c0_82 = arith.constant 0 : index
    %311 = vector.load %arg7[%c0_81, %c0_82] : memref<1x128xf32, #tpu.memory_space<vmem>>, vector<1x128xf32>
    %312 = vector.broadcast %311 : vector<1x128xf32> to vector<64x128xf32>
    %313 = arith.addf %310, %312 : vector<64x128xf32>
    %c0_83 = arith.constant 0 : index
    %c0_84 = arith.constant 0 : index
    %314 = vector.load %arg8[%c0_83, %c0_84] : memref<64x128xf32, #tpu.memory_space<vmem>>, vector<64x128xf32>
    tpu.vector_store %arg8[%c0_83, %c0_84], %313 {strides = array<i32>} : memref<64x128xf32, #tpu.memory_space<vmem>>, vector<64x128xf32>,
    return
  }
  func.func @transform_0(%arg0: i32) -> (i32, i32) {
    %c0_i32 = arith.constant 0 : i32
    %c0_i32_0 = arith.constant 0 : i32
    return %arg0, %c0_i32 : i32, i32
  }
  func.func @transform_1(%arg0: i32) -> (i32, i32) {
    %c0_i32 = arith.constant 0 : i32
    %c0_i32_0 = arith.constant 0 : i32
    %c0_i32_1 = arith.constant 0 : i32
    return %c0_i32, %c0_i32_0 : i32, i32
  }
  func.func @transform_2(%arg0: i32) -> (i32, i32) {
    %c0_i32 = arith.constant 0 : i32
    %c0_i32_0 = arith.constant 0 : i32
    %c0_i32_1 = arith.constant 0 : i32
    return %c0_i32, %c0_i32_0 : i32, i32
  }
  func.func @transform_3(%arg0: i32) -> (i32, i32) {
    %c0_i32 = arith.constant 0 : i32
    %c0_i32_0 = arith.constant 0 : i32
    %c0_i32_1 = arith.constant 0 : i32
    return %c0_i32, %c0_i32_0 : i32, i32
  }
  func.func @transform_4(%arg0: i32) -> (i32, i32) {
    %c0_i32 = arith.constant 0 : i32
    %c0_i32_0 = arith.constant 0 : i32
    %c0_i32_1 = arith.constant 0 : i32
    return %c0_i32, %c0_i32_0 : i32, i32
  }
  func.func @transform_5(%arg0: i32) -> (i32, i32) {
    %c0_i32 = arith.constant 0 : i32
    %c0_i32_0 = arith.constant 0 : i32
    %c0_i32_1 = arith.constant 0 : i32
    return %c0_i32, %c0_i32_0 : i32, i32
  }
  func.func @transform_6(%arg0: i32) -> (i32, i32) {
    %c0_i32 = arith.constant 0 : i32
    %c0_i32_0 = arith.constant 0 : i32
    %c0_i32_1 = arith.constant 0 : i32
    return %c0_i32, %c0_i32_0 : i32, i32
  }
  func.func @transform_7(%arg0: i32) -> (i32, i32) {
    %c0_i32 = arith.constant 0 : i32
    %c0_i32_0 = arith.constant 0 : i32
    return %arg0, %c0_i32 : i32, i32
  }
}

</mosaic_0001>

<llo_original>
// kernel: gru_regression_forward.1
$region0: #{gru_regression_forward.1}
  #allocation0 [shape = 'u32[]', space=smem, size = 0x4, offset = 0x4, fixed_abs, tag = 'smem constant byte address 0x4 - core index']
  #allocation1 [shape = 'u32[144,128]{1,0:T(1,128)}', space=vmem, size = 0x12000, scoped, tag = 'internal scratch']
  #allocation2 [shape = 'f32[64,128]{1,0:T(8,128)}', space=vmem, size = 0x8000, scoped, tag = 'scratch operand']
  #allocation3 [shape = 'f32[64,32]{1,0:T(8,128)}', space=vmem, size = 0x8000, scoped, tag = 'scratch operand']
  %s0 = inlined_call_operand.vmem [shape: f32[64,8], index: 0, kind: input, shape index: {}]
  %s1 = inlined_call_operand.vmem [shape: bf16[8,128], index: 1, kind: input, shape index: {}]
  %s2 = inlined_call_operand.vmem [shape: bf16[32,128], index: 2, kind: input, shape index: {}]
  %s3 = inlined_call_operand.vmem [shape: f32[1,128], index: 3, kind: input, shape index: {}]
  %s4 = inlined_call_operand.vmem [shape: f32[1,32], index: 4, kind: input, shape index: {}]
  %s5 = inlined_call_operand.vmem [shape: bf16[32,128], index: 5, kind: input, shape index: {}]
  %s6 = inlined_call_operand.vmem [shape: f32[1,128], index: 6, kind: input, shape index: {}]
  %s7 = inlined_call_operand.vmem [shape: f32[64,128], index: 7, kind: output, shape index: {}]
  %s8 = sld [smem:[#allocation0]]
  $region38: #{gru_regression_forward.1} parent=0
    _
  %s10 = ssub.s32 1, %s8
  %s11 = scalar_select 0, %s10, %s8
  // Predicated region
  $region2: #{gru_regression_forward.1} parent=0 // pred_check
    _
  $region3: #{gru_regression_forward.1} parent=0 // pred_check_branch
    %13 = sbr.rel (0) target = $region5
  $region4: #{gru_regression_forward.1} parent=0 // pred_region
    _
  $region5: #{gru_regression_forward.1} parent=0 // pred_fallthru
    _
  // Predicated region
  $region6: #{gru_regression_forward.1} parent=0 // pred_check
    _
  $region7: #{gru_regression_forward.1} parent=0 // pred_check_branch
    %15 = sbr.rel (0) target = $region9
  $region8: #{gru_regression_forward.1} parent=0 // pred_region
    _
  $region9: #{gru_regression_forward.1} parent=0 // pred_fallthru
    _
  // Predicated region
  $region10: #{gru_regression_forward.1} parent=0 // pred_check
    _
  $region11: #{gru_regression_forward.1} parent=0 // pred_check_branch
    %17 = sbr.rel (0) target = $region13
  $region12: #{gru_regression_forward.1} parent=0 // pred_region
    _
  $region13: #{gru_regression_forward.1} parent=0 // pred_fallthru
    _
  // Predicated region
  $region14: #{gru_regression_forward.1} parent=0 // pred_check
    _
  $region15: #{gru_regression_forward.1} parent=0 // pred_check_branch
    %19 = sbr.rel (0) target = $region17
  $region16: #{gru_regression_forward.1} parent=0 // pred_region
    _
  $region17: #{gru_regression_forward.1} parent=0 // pred_fallthru
    _
  // Predicated region
  $region18: #{gru_regression_forward.1} parent=0 // pred_check
    _
  $region19: #{gru_regression_forward.1} parent=0 // pred_check_branch
    %21 = sbr.rel (0) target = $region21
  $region20: #{gru_regression_forward.1} parent=0 // pred_region
    _
  $region21: #{gru_regression_forward.1} parent=0 // pred_fallthru
    _
  // Predicated region
  $region22: #{gru_regression_forward.1} parent=0 // pred_check
    _
  $region23: #{gru_regression_forward.1} parent=0 // pred_check_branch
    %23 = sbr.rel (0) target = $region25
  $region24: #{gru_regression_forward.1} parent=0 // pred_region
    _
  $region25: #{gru_regression_forward.1} parent=0 // pred_fallthru
    _
  // Predicated region
  $region26: #{gru_regression_forward.1} parent=0 // pred_check
    _
  $region27: #{gru_regression_forward.1} parent=0 // pred_check_branch
    %25 = sbr.rel (0) target = $region29
  $region28: #{gru_regression_forward.1} parent=0 // pred_region
    _
  $region29: #{gru_regression_forward.1} parent=0 // pred_fallthru
    _
  %v27 = vld [vmem:[%s0] sm:$0xff]
  %v28 = vld [vmem:[%s0 + $0x8] sm:$0xff]
  %v29 = vld [vmem:[%s0 + $0x10] sm:$0xff]
  %v30 = vld [vmem:[%s0 + $0x18] sm:$0xff]
  %v31 = vld [vmem:[%s0 + $0x20] sm:$0xff]
  %v32 = vld [vmem:[%s0 + $0x28] sm:$0xff]
  %v33 = vld [vmem:[%s0 + $0x30] sm:$0xff]
  %v34 = vld [vmem:[%s0 + $0x38] sm:$0xff]
  %v35 = vpack.c.bf16 %v28, %v27
  %v36 = vpack.c.bf16 %v30, %v29
  %v37 = vpack.c.bf16 %v32, %v31
  %v38 = vpack.c.bf16 %v34, %v33
  %v39 = vld [vmem:[%s1] sm:$0xf]
  %v40 = vld [vmem:[%s3] sm:$0x1]
  %v42 = vlaneseq
  %v43 = vshrl.u32 %v42, 7
  %v44 = vsub.s32 0, %v43
  %v45 = vrot.slane %v40, %v44
  %vm47 = vcmask 64512
  %v49 = vsel %vm47, %v35, 0
  %v52 = vsel %vm47, %v36, 0
  %v55 = vsel %vm47, %v37, 0
  %v58 = vsel %vm47, %v38, 0
  %vm60 = vcmask 1043456
  %v62 = vsel %vm60, %v39, 0
  %64 = vmatprep.subr.bf16.mxu0 0
  %65 = vmatpush1.bf16.msra.mxu0 %v62
  %66 = vmatprep.subr.bf16.mxu0 0
  %67 = vmatpush1.bf16.msra.mxu0 0
  %68 = vmatprep.subr.bf16.mxu0 0
  %69 = vmatpush1.bf16.msra.mxu0 0
  %70 = vmatprep.subr.bf16.mxu0 0
  %71 = vmatpush1.bf16.msra.mxu0 0
  %72 = vmatprep.subr.bf16.mxu0 0
  %73 = vmatpush1.bf16.msra.mxu0 0
  %74 = vmatprep.subr.bf16.mxu0 0
  %75 = vmatpush1.bf16.msra.mxu0 0
  %76 = vmatprep.subr.bf16.mxu0 0
  %77 = vmatpush1.bf16.msra.mxu0 0
  %78 = vmatprep.subr.bf16.mxu0 0
  %79 = vmatpush1.bf16.msra.mxu0 0
  %80 = vmatprep.subr.bf16.mxu0 0
  %81 = vmatpush1.bf16.msra.mxu0 0
  %82 = vmatprep.subr.bf16.mxu0 0
  %83 = vmatpush1.bf16.msra.mxu0 0
  %84 = vmatprep.subr.bf16.mxu0 0
  %85 = vmatpush1.bf16.msra.mxu0 0
  %86 = vmatprep.subr.bf16.mxu0 0
  %87 = vmatpush1.bf16.msra.mxu0 0
  %88 = vmatprep.subr.bf16.mxu0 0
  %89 = vmatpush1.bf16.msra.mxu0 0
  %90 = vmatprep.subr.bf16.mxu0 0
  %91 = vmatpush1.bf16.msra.mxu0 0
  %92 = vmatprep.subr.bf16.mxu0 0
  %93 = vmatpush1.bf16.msra.mxu0 0
  %94 = vmatprep.subr.bf16.mxu0 0
  %95 = vmatpush1.bf16.msra.mxu0 0
  %96 = vmatprep.mubr.bf16.mxu0 0
  %97 = vmatmul.mubr.bf16.gmra.mrb[0].mxu0 %v49
  %v98 = vpop.f32.mrb[0].mxu0
  %v99 = vadd.f32 %v45, %v98
  %v100 = vpop.f32.mrb[0].mxu0
  %v101 = vpop.f32.mrb[0].mxu0
  %v102 = vadd.f32 %v45, %v101
  %v103 = vpop.f32.mrb[0].mxu0
  %104 = vmatprep.mubr.bf16.mxu0 0
  %105 = vmatmul.mubr.bf16.gmra.mrb[0].mxu0 %v52
  %v106 = vpop.f32.mrb[0].mxu0
  %v107 = vadd.f32 %v45, %v106
  %v108 = vpop.f32.mrb[0].mxu0
  %v109 = vpop.f32.mrb[0].mxu0
  %v110 = vadd.f32 %v45, %v109
  %v111 = vpop.f32.mrb[0].mxu0
  %112 = vmatprep.mubr.bf16.mxu0 0
  %113 = vmatmul.mubr.bf16.gmra.mrb[0].mxu0 %v55
  %v114 = vpop.f32.mrb[0].mxu0
  %v115 = vadd.f32 %v45, %v114
  %v116 = vpop.f32.mrb[0].mxu0
  %v117 = vpop.f32.mrb[0].mxu0
  %v118 = vadd.f32 %v45, %v117
  %v119 = vpop.f32.mrb[0].mxu0
  %120 = vmatprep.mubr.bf16.mxu0 0
  %121 = vmatmul.mubr.bf16.gmra.mrb[0].mxu0 %v58
  %v122 = vpop.f32.mrb[0].mxu0
  %v123 = vadd.f32 %v45, %v122
  %v124 = vpop.f32.mrb[0].mxu0
  %v125 = vpop.f32.mrb[0].mxu0
  %v126 = vadd.f32 %v45, %v125
  %v127 = vpop.f32.mrb[0].mxu0
  %128 = vdwg.mxu0
  %129 = vst [vmem:[#allocation2] sm:$0xff] %v99
  %130 = vst [vmem:[#allocation2 + $0x8] sm:$0xff] %v102
  %131 = vst [vmem:[#allocation2 + $0x10] sm:$0xff] %v107
  %132 = vst [vmem:[#allocation2 + $0x18] sm:$0xff] %v110
  %133 = vst [vmem:[#allocation2 + $0x20] sm:$0xff] %v115
  %134 = vst [vmem:[#allocation2 + $0x28] sm:$0xff] %v118
  %135 = vst [vmem:[#allocation2 + $0x30] sm:$0xff] %v123
  %136 = vst [vmem:[#allocation2 + $0x38] sm:$0xff] %v126
  %v137 = vld [vmem:[%s2] sm:$0xf]
  %v138 = vld [vmem:[%s2 + $0x4] sm:$0xf]
  %v139 = vld [vmem:[%s2 + $0x8] sm:$0xf]
  %v140 = vld [vmem:[%s2 + $0xc] sm:$0xf]
  %v141 = vld [vmem:[%s4] sm:$0x1]
  %v142 = vld [vmem:[#allocation2] sm:$0xff]
  %v147 = vunpack.c.l.b16 %v137
  %v148 = vunpack.c.l.b16 %v138
  %v149 = vunpack.c.l.b16 %v139
  %v150 = vunpack.c.l.b16 %v140
  %v151 = vpack.c.b16 %v148, %v147
  %v152 = vpack.c.b16 %v150, %v149
  %vm155 = vcmask 261120
  %v157 = vsel %vm155, 0, 0
  %159 = vmatprep.subr.bf16.mxu0 0
  %160 = vmatpush1.bf16.msra.mxu0 %v151
  %161 = vmatprep.subr.bf16.mxu0 0
  %162 = vmatpush1.bf16.msra.mxu0 %v152
  %163 = vmatprep.subr.bf16.mxu0 0
  %164 = vmatpush1.bf16.msra.mxu0 0
  %165 = vmatprep.subr.bf16.mxu0 0
  %166 = vmatpush1.bf16.msra.mxu0 0
  %167 = vmatprep.subr.bf16.mxu0 0
  %168 = vmatpush1.bf16.msra.mxu0 0
  %169 = vmatprep.subr.bf16.mxu0 0
  %170 = vmatpush1.bf16.msra.mxu0 0
  %171 = vmatprep.subr.bf16.mxu0 0
  %172 = vmatpush1.bf16.msra.mxu0 0
  %173 = vmatprep.subr.bf16.mxu0 0
  %174 = vmatpush1.bf16.msra.mxu0 0
  %175 = vmatprep.subr.bf16.mxu0 0
  %176 = vmatpush1.bf16.msra.mxu0 0
  %177 = vmatprep.subr.bf16.mxu0 0
  %178 = vmatpush1.bf16.msra.mxu0 0
  %179 = vmatprep.subr.bf16.mxu0 0
  %180 = vmatpush1.bf16.msra.mxu0 0
  %181 = vmatprep.subr.bf16.mxu0 0
  %182 = vmatpush1.bf16.msra.mxu0 0
  %183 = vmatprep.subr.bf16.mxu0 0
  %184 = vmatpush1.bf16.msra.mxu0 0
  %185 = vmatprep.subr.bf16.mxu0 0
  %186 = vmatpush1.bf16.msra.mxu0 0
  %187 = vmatprep.subr.bf16.mxu0 0
  %188 = vmatpush1.bf16.msra.mxu0 0
  %189 = vmatprep.subr.bf16.mxu0 0
  %190 = vmatpush1.bf16.msra.mxu0 0
  %191 = vmatprep.mubr.bf16.mxu0 0
  %192 = vmatmul.mubr.bf16.gmra.mrb[0].mxu0 %v157
  %v193 = vpop.f32.mrb[0].mxu0
  %v194 = vadd.f32 0.0, %v193
  %v195 = vpop.f32.mrb[0].mxu0
  %v196 = vpop.f32.mrb[0].mxu0
  %v197 = vpop.f32.mrb[0].mxu0
  %198 = vdwg.mxu0
  %v199 = vadd.f32 %v142, %v194
  %v200 = vxor.u32 %v199, 2147483648
  %v201 = vmul.f32 %v200, 1.442695
  %v202 = vpow.pop %v201
  %v203 = vadd.f32 %v202, 1.0
  %v204 = vrcp.pop %v203
  %v205 = vmul.f32 1.0, %v204
  %v207 = vlaneseq
  %v208 = vshrl.u32 %v207, 7
  %v209 = vsub.s32 0, %v208
  %v210 = vrot.slane %v141, %v209
  %211 = vrot.lane.b32.xlu0 %v210, 64
  %v212 = vpop.permute.xlu0 %211
  %v214 = vadd.f32 %v194, %v212
  %216 = vrot.lane.b32.xlu0 %v214, 64
  %v217 = vpop.permute.xlu0 %216
  %v219 = vmul.f32 %v205, %v217
  %221 = vrot.lane.b32.xlu0 %v219, 64
  %v222 = vpop.permute.xlu0 %221
  %v224 = vadd.f32 %v142, %v222
  %v225 = vtanh.pop %v224
  %v226 = vsub.f32 1.0, %v205
  %228 = vrot.lane.b32.xlu0 %v225, 96
  %v229 = vpop.permute.xlu0 %228
  %v231 = vmul.f32 %v226, %v229
  %v232 = vmul.f32 %v205, 0.0
  %v233 = vadd.f32 %v231, %v232
  %v234 = vmax.f32 %v233, 0.0
  %236 = vrot.lane.b32.xlu0 %v234, 96
  %v237 = vpop.permute.xlu0 %236
  %239 = vst.msk [vmem:[#allocation3] sm:$0xff] %vm155, %v237
  %v240 = vld [vmem:[#allocation2 + $0x8] sm:$0xff]
  %v241 = vpack.c.bf16 %v233, %v233
  %243 = vrot.lane.b32.xlu0 %v241, 96
  %v244 = vpop.permute.xlu0 %243
  %v246 = vsel %vm155, %v244, 0
  %248 = vmatprep.subr.bf16.mxu0 0
  %249 = vmatpush1.bf16.msra.mxu0 %v151
  %250 = vmatprep.subr.bf16.mxu0 0
  %251 = vmatpush1.bf16.msra.mxu0 %v152
  %252 = vmatprep.subr.bf16.mxu0 0
  %253 = vmatpush1.bf16.msra.mxu0 0
  %254 = vmatprep.subr.bf16.mxu0 0
  %255 = vmatpush1.bf16.msra.mxu0 0
  %256 = vmatprep.subr.bf16.mxu0 0
  %257 = vmatpush1.bf16.msra.mxu0 0
  %258 = vmatprep.subr.bf16.mxu0 0
  %259 = vmatpush1.bf16.msra.mxu0 0
  %260 = vmatprep.subr.bf16.mxu0 0
  %261 = vmatpush1.bf16.msra.mxu0 0
  %262 = vmatprep.subr.bf16.mxu0 0
  %263 = vmatpush1.bf16.msra.mxu0 0
  %264 = vmatprep.subr.bf16.mxu0 0
  %265 = vmatpush1.bf16.msra.mxu0 0
  %266 = vmatprep.subr.bf16.mxu0 0
  %267 = vmatpush1.bf16.msra.mxu0 0
  %268 = vmatprep.subr.bf16.mxu0 0
  %269 = vmatpush1.bf16.msra.mxu0 0
  %270 = vmatprep.subr.bf16.mxu0 0
  %271 = vmatpush1.bf16.msra.mxu0 0
  %272 = vmatprep.subr.bf16.mxu0 0
  %273 = vmatpush1.bf16.msra.mxu0 0
  %274 = vmatprep.subr.bf16.mxu0 0
  %275 = vmatpush1.bf16.msra.mxu0 0
  %276 = vmatprep.subr.bf16.mxu0 0
  %277 = vmatpush1.bf16.msra.mxu0 0
  %278 = vmatprep.subr.bf16.mxu0 0
  %279 = vmatpush1.bf16.msra.mxu0 0
  %280 = vmatprep.mubr.bf16.mxu0 0
  %281 = vmatmul.mubr.bf16.gmra.mrb[0].mxu0 %v246
  %v282 = vpop.f32.mrb[0].mxu0
  %v283 = vadd.f32 0.0, %v282
  %v284 = vpop.f32.mrb[0].mxu0
  %v285 = vpop.f32.mrb[0].mxu0
  %v286 = vpop.f32.mrb[0].mxu0
  %287 = vdwg.mxu0
  %v288 = vadd.f32 %v240, %v283
  %v289 = vxor.u32 %v288, 2147483648
  %v290 = vmul.f32 %v289, 1.442695
  %v291 = vpow.pop %v290
  %v292 = vadd.f32 %v291, 1.0
  %v293 = vrcp.pop %v292
  %v294 = vmul.f32 1.0, %v293
  %v295 = vadd.f32 %v283, %v212
  %297 = vrot.lane.b32.xlu0 %v295, 64
  %v298 = vpop.permute.xlu0 %297
  %v300 = vmul.f32 %v294, %v298
  %302 = vrot.lane.b32.xlu0 %v300, 64
  %v303 = vpop.permute.xlu0 %302
  %v305 = vadd.f32 %v240, %v303
  %v306 = vtanh.pop %v305
  %v307 = vsub.f32 1.0, %v294
  %309 = vrot.lane.b32.xlu0 %v306, 96
  %v310 = vpop.permute.xlu0 %309
  %v312 = vmul.f32 %v307, %v310
  %v313 = vmul.f32 %v294, %v233
  %v314 = vadd.f32 %v312, %v313
  %v315 = vmax.f32 %v314, 0.0
  %317 = vrot.lane.b32.xlu0 %v315, 96
  %v318 = vpop.permute.xlu0 %317
  %320 = vst.msk [vmem:[#allocation3 + $0x8] sm:$0xff] %vm155, %v318
  %v321 = vld [vmem:[#allocation2 + $0x10] sm:$0xff]
  %v322 = vpack.c.bf16 %v314, %v314
  %324 = vrot.lane.b32.xlu0 %v322, 96
  %v325 = vpop.permute.xlu0 %324
  %v327 = vsel %vm155, %v325, 0
  %329 = vmatprep.subr.bf16.mxu0 0
  %330 = vmatpush1.bf16.msra.mxu0 %v151
  %331 = vmatprep.subr.bf16.mxu0 0
  %332 = vmatpush1.bf16.msra.mxu0 %v152
  %333 = vmatprep.subr.bf16.mxu0 0
  %334 = vmatpush1.bf16.msra.mxu0 0
  %335 = vmatprep.subr.bf16.mxu0 0
  %336 = vmatpush1.bf16.msra.mxu0 0
  %337 = vmatprep.subr.bf16.mxu0 0
  %338 = vmatpush1.bf16.msra.mxu0 0
  %339 = vmatprep.subr.bf16.mxu0 0
  %340 = vmatpush1.bf16.msra.mxu0 0
  %341 = vmatprep.subr.bf16.mxu0 0
  %342 = vmatpush1.bf16.msra.mxu0 0
  %343 = vmatprep.subr.bf16.mxu0 0
  %344 = vmatpush1.bf16.msra.mxu0 0
  %345 = vmatprep.subr.bf16.mxu0 0
  %346 = vmatpush1.bf16.msra.mxu0 0
  %347 = vmatprep.subr.bf16.mxu0 0
  %348 = vmatpush1.bf16.msra.mxu0 0
  %349 = vmatprep.subr.bf16.mxu0 0
  %350 = vmatpush1.bf16.msra.mxu0 0
  %351 = vmatprep.subr.bf16.mxu0 0
  %352 = vmatpush1.bf16.msra.mxu0 0
  %353 = vmatprep.subr.bf16.mxu0 0
  %354 = vmatpush1.bf16.msra.mxu0 0
  %355 = vmatprep.subr.bf16.mxu0 0
  %356 = vmatpush1.bf16.msra.mxu0 0
  %357 = vmatprep.subr.bf16.mxu0 0
  %358 = vmatpush1.bf16.msra.mxu0 0
  %359 = vmatprep.subr.bf16.mxu0 0
  %360 = vmatpush1.bf16.msra.mxu0 0
  %361 = vmatprep.mubr.bf16.mxu0 0
  %362 = vmatmul.mubr.bf16.gmra.mrb[0].mxu0 %v327
  %v363 = vpop.f32.mrb[0].mxu0
  %v364 = vadd.f32 0.0, %v363
  %v365 = vpop.f32.mrb[0].mxu0
  %v366 = vpop.f32.mrb[0].mxu0
  %v367 = vpop.f32.mrb[0].mxu0
  %368 = vdwg.mxu0
  %v369 = vadd.f32 %v321, %v364
  %v370 = vxor.u32 %v369, 2147483648
  %v371 = vmul.f32 %v370, 1.442695
  %v372 = vpow.pop %v371
  %v373 = vadd.f32 %v372, 1.0
  %v374 = vrcp.pop %v373
  %v375 = vmul.f32 1.0, %v374
  %v376 = vadd.f32 %v364, %v212
  %378 = vrot.lane.b32.xlu0 %v376, 64
  %v379 = vpop.permute.xlu0 %378
  %v381 = vmul.f32 %v375, %v379
  %383 = vrot.lane.b32.xlu0 %v381, 64
  %v384 = vpop.permute.xlu0 %383
  %v386 = vadd.f32 %v321, %v384
  %v387 = vtanh.pop %v386
  %v388 = vsub.f32 1.0, %v375
  %390 = vrot.lane.b32.xlu0 %v387, 96
  %v391 = vpop.permute.xlu0 %390
  %v393 = vmul.f32 %v388, %v391
  %v394 = vmul.f32 %v375, %v314
  %v395 = vadd.f32 %v393, %v394
  %v396 = vmax.f32 %v395, 0.0
  %398 = vrot.lane.b32.xlu0 %v396, 96
  %v399 = vpop.permute.xlu0 %398
  %401 = vst.msk [vmem:[#allocation3 + $0x10] sm:$0xff] %vm155, %v399
  %v402 = vld [vmem:[#allocation2 + $0x18] sm:$0xff]
  %v403 = vpack.c.bf16 %v395, %v395
  %405 = vrot.lane.b32.xlu0 %v403, 96
  %v406 = vpop.permute.xlu0 %405
  %v408 = vsel %vm155, %v406, 0
  %410 = vmatprep.subr.bf16.mxu0 0
  %411 = vmatpush1.bf16.msra.mxu0 %v151
  %412 = vmatprep.subr.bf16.mxu0 0
  %413 = vmatpush1.bf16.msra.mxu0 %v152
  %414 = vmatprep.subr.bf16.mxu0 0
  %415 = vmatpush1.bf16.msra.mxu0 0
  %416 = vmatprep.subr.bf16.mxu0 0
  %417 = vmatpush1.bf16.msra.mxu0 0
  %418 = vmatprep.subr.bf16.mxu0 0
  %419 = vmatpush1.bf16.msra.mxu0 0
  %420 = vmatprep.subr.bf16.mxu0 0
  %421 = vmatpush1.bf16.msra.mxu0 0
  %422 = vmatprep.subr.bf16.mxu0 0
  %423 = vmatpush1.bf16.msra.mxu0 0
  %424 = vmatprep.subr.bf16.mxu0 0
  %425 = vmatpush1.bf16.msra.mxu0 0
  %426 = vmatprep.subr.bf16.mxu0 0
  %427 = vmatpush1.bf16.msra.mxu0 0
  %428 = vmatprep.subr.bf16.mxu0 0
  %429 = vmatpush1.bf16.msra.mxu0 0
  %430 = vmatprep.subr.bf16.mxu0 0
  %431 = vmatpush1.bf16.msra.mxu0 0
  %432 = vmatprep.subr.bf16.mxu0 0
  %433 = vmatpush1.bf16.msra.mxu0 0
  %434 = vmatprep.subr.bf16.mxu0 0
  %435 = vmatpush1.bf16.msra.mxu0 0
  %436 = vmatprep.subr.bf16.mxu0 0
  %437 = vmatpush1.bf16.msra.mxu0 0
  %438 = vmatprep.subr.bf16.mxu0 0
  %439 = vmatpush1.bf16.msra.mxu0 0
  %440 = vmatprep.subr.bf16.mxu0 0
  %441 = vmatpush1.bf16.msra.mxu0 0
  %442 = vmatprep.mubr.bf16.mxu0 0
  %443 = vmatmul.mubr.bf16.gmra.mrb[0].mxu0 %v408
  %v444 = vpop.f32.mrb[0].mxu0
  %v445 = vadd.f32 0.0, %v444
  %v446 = vpop.f32.mrb[0].mxu0
  %v447 = vpop.f32.mrb[0].mxu0
  %v448 = vpop.f32.mrb[0].mxu0
  %449 = vdwg.mxu0
  %v450 = vadd.f32 %v402, %v445
  %v451 = vxor.u32 %v450, 2147483648
  %v452 = vmul.f32 %v451, 1.442695
  %v453 = vpow.pop %v452
  %v454 = vadd.f32 %v453, 1.0
  %v455 = vrcp.pop %v454
  %v456 = vmul.f32 1.0, %v455
  %v457 = vadd.f32 %v445, %v212
  %459 = vrot.lane.b32.xlu0 %v457, 64
  %v460 = vpop.permute.xlu0 %459
  %v462 = vmul.f32 %v456, %v460
  %464 = vrot.lane.b32.xlu0 %v462, 64
  %v465 = vpop.permute.xlu0 %464
  %v467 = vadd.f32 %v402, %v465
  %v468 = vtanh.pop %v467
  %v469 = vsub.f32 1.0, %v456
  %471 = vrot.lane.b32.xlu0 %v468, 96
  %v472 = vpop.permute.xlu0 %471
  %v474 = vmul.f32 %v469, %v472
  %v475 = vmul.f32 %v456, %v395
  %v476 = vadd.f32 %v474, %v475
  %v477 = vmax.f32 %v476, 0.0
  %479 = vrot.lane.b32.xlu0 %v477, 96
  %v480 = vpop.permute.xlu0 %479
  %482 = vst.msk [vmem:[#allocation3 + $0x18] sm:$0xff] %vm155, %v480
  %v483 = vld [vmem:[#allocation2 + $0x20] sm:$0xff]
  %v484 = vpack.c.bf16 %v476, %v476
  %486 = vrot.lane.b32.xlu0 %v484, 96
  %v487 = vpop.permute.xlu0 %486
  %v489 = vsel %vm155, %v487, 0
  %491 = vmatprep.subr.bf16.mxu0 0
  %492 = vmatpush1.bf16.msra.mxu0 %v151
  %493 = vmatprep.subr.bf16.mxu0 0
  %494 = vmatpush1.bf16.msra.mxu0 %v152
  %495 = vmatprep.subr.bf16.mxu0 0
  %496 = vmatpush1.bf16.msra.mxu0 0
  %497 = vmatprep.subr.bf16.mxu0 0
  %498 = vmatpush1.bf16.msra.mxu0 0
  %499 = vmatprep.subr.bf16.mxu0 0
  %500 = vmatpush1.bf16.msra.mxu0 0
  %501 = vmatprep.subr.bf16.mxu0 0
  %502 = vmatpush1.bf16.msra.mxu0 0
  %503 = vmatprep.subr.bf16.mxu0 0
  %504 = vmatpush1.bf16.msra.mxu0 0
  %505 = vmatprep.subr.bf16.mxu0 0
  %506 = vmatpush1.bf16.msra.mxu0 0
  %507 = vmatprep.subr.bf16.mxu0 0
  %508 = vmatpush1.bf16.msra.mxu0 0
  %509 = vmatprep.subr.bf16.mxu0 0
  %510 = vmatpush1.bf16.msra.mxu0 0
  %511 = vmatprep.subr.bf16.mxu0 0
  %512 = vmatpush1.bf16.msra.mxu0 0
  %513 = vmatprep.subr.bf16.mxu0 0
  %514 = vmatpush1.bf16.msra.mxu0 0
  %515 = vmatprep.subr.bf16.mxu0 0
  %516 = vmatpush1.bf16.msra.mxu0 0
  %517 = vmatprep.subr.bf16.mxu0 0
  %518 = vmatpush1.bf16.msra.mxu0 0
  %519 = vmatprep.subr.bf16.mxu0 0
  %520 = vmatpush1.bf16.msra.mxu0 0
  %521 = vmatprep.subr.bf16.mxu0 0
  %522 = vmatpush1.bf16.msra.mxu0 0
  %523 = vmatprep.mubr.bf16.mxu0 0
  %524 = vmatmul.mubr.bf16.gmra.mrb[0].mxu0 %v489
  %v525 = vpop.f32.mrb[0].mxu0
  %v526 = vadd.f32 0.0, %v525
  %v527 = vpop.f32.mrb[0].mxu0
  %v528 = vpop.f32.mrb[0].mxu0
  %v529 = vpop.f32.mrb[0].mxu0
  %530 = vdwg.mxu0
  %v531 = vadd.f32 %v483, %v526
  %v532 = vxor.u32 %v531, 2147483648
  %v533 = vmul.f32 %v532, 1.442695
  %v534 = vpow.pop %v533
  %v535 = vadd.f32 %v534, 1.0
  %v536 = vrcp.pop %v535
  %v537 = vmul.f32 1.0, %v536
  %v538 = vadd.f32 %v526, %v212
  %540 = vrot.lane.b32.xlu0 %v538, 64
  %v541 = vpop.permute.xlu0 %540
  %v543 = vmul.f32 %v537, %v541
  %545 = vrot.lane.b32.xlu0 %v543, 64
  %v546 = vpop.permute.xlu0 %545
  %v548 = vadd.f32 %v483, %v546
  %v549 = vtanh.pop %v548
  %v550 = vsub.f32 1.0, %v537
  %552 = vrot.lane.b32.xlu0 %v549, 96
  %v553 = vpop.permute.xlu0 %552
  %v555 = vmul.f32 %v550, %v553
  %v556 = vmul.f32 %v537, %v476
  %v557 = vadd.f32 %v555, %v556
  %v558 = vmax.f32 %v557, 0.0
  %560 = vrot.lane.b32.xlu0 %v558, 96
  %v561 = vpop.permute.xlu0 %560
  %563 = vst.msk [vmem:[#allocation3 + $0x20] sm:$0xff] %vm155, %v561
  %v564 = vld [vmem:[#allocation2 + $0x28] sm:$0xff]
  %v565 = vpack.c.bf16 %v557, %v557
  %567 = vrot.lane.b32.xlu0 %v565, 96
  %v568 = vpop.permute.xlu0 %567
  %v570 = vsel %vm155, %v568, 0
  %572 = vmatprep.subr.bf16.mxu0 0
  %573 = vmatpush1.bf16.msra.mxu0 %v151
  %574 = vmatprep.subr.bf16.mxu0 0
  %575 = vmatpush1.bf16.msra.mxu0 %v152
  %576 = vmatprep.subr.bf16.mxu0 0
  %577 = vmatpush1.bf16.msra.mxu0 0
  %578 = vmatprep.subr.bf16.mxu0 0
  %579 = vmatpush1.bf16.msra.mxu0 0
  %580 = vmatprep.subr.bf16.mxu0 0
  %581 = vmatpush1.bf16.msra.mxu0 0
  %582 = vmatprep.subr.bf16.mxu0 0
  %583 = vmatpush1.bf16.msra.mxu0 0
  %584 = vmatprep.subr.bf16.mxu0 0
  %585 = vmatpush1.bf16.msra.mxu0 0
  %586 = vmatprep.subr.bf16.mxu0 0
  %587 = vmatpush1.bf16.msra.mxu0 0
  %588 = vmatprep.subr.bf16.mxu0 0
  %589 = vmatpush1.bf16.msra.mxu0 0
  %590 = vmatprep.subr.bf16.mxu0 0
  %591 = vmatpush1.bf16.msra.mxu0 0
  %592 = vmatprep.subr.bf16.mxu0 0
  %593 = vmatpush1.bf16.msra.mxu0 0
  %594 = vmatprep.subr.bf16.mxu0 0
  %595 = vmatpush1.bf16.msra.mxu0 0
  %596 = vmatprep.subr.bf16.mxu0 0
  %597 = vmatpush1.bf16.msra.mxu0 0
  %598 = vmatprep.subr.bf16.mxu0 0
  %599 = vmatpush1.bf16.msra.mxu0 0
  %600 = vmatprep.subr.bf16.mxu0 0
  %601 = vmatpush1.bf16.msra.mxu0 0
  %602 = vmatprep.subr.bf16.mxu0 0
  %603 = vmatpush1.bf16.msra.mxu0 0
  %604 = vmatprep.mubr.bf16.mxu0 0
  %605 = vmatmul.mubr.bf16.gmra.mrb[0].mxu0 %v570
  %v606 = vpop.f32.mrb[0].mxu0
  %v607 = vadd.f32 0.0, %v606
  %v608 = vpop.f32.mrb[0].mxu0
  %v609 = vpop.f32.mrb[0].mxu0
  %v610 = vpop.f32.mrb[0].mxu0
  %611 = vdwg.mxu0
  %v612 = vadd.f32 %v564, %v607
  %v613 = vxor.u32 %v612, 2147483648
  %v614 = vmul.f32 %v613, 1.442695
  %v615 = vpow.pop %v614
  %v616 = vadd.f32 %v615, 1.0
  %v617 = vrcp.pop %v616
  %v618 = vmul.f32 1.0, %v617
  %v619 = vadd.f32 %v607, %v212
  %621 = vrot.lane.b32.xlu0 %v619, 64
  %v622 = vpop.permute.xlu0 %621
  %v624 = vmul.f32 %v618, %v622
  %626 = vrot.lane.b32.xlu0 %v624, 64
  %v627 = vpop.permute.xlu0 %626
  %v629 = vadd.f32 %v564, %v627
  %v630 = vtanh.pop %v629
  %v631 = vsub.f32 1.0, %v618
  %633 = vrot.lane.b32.xlu0 %v630, 96
  %v634 = vpop.permute.xlu0 %633
  %v636 = vmul.f32 %v631, %v634
  %v637 = vmul.f32 %v618, %v557
  %v638 = vadd.f32 %v636, %v637
  %v639 = vmax.f32 %v638, 0.0
  %641 = vrot.lane.b32.xlu0 %v639, 96
  %v642 = vpop.permute.xlu0 %641
  %644 = vst.msk [vmem:[#allocation3 + $0x28] sm:$0xff] %vm155, %v642
  %v645 = vld [vmem:[#allocation2 + $0x30] sm:$0xff]
  %v646 = vpack.c.bf16 %v638, %v638
  %648 = vrot.lane.b32.xlu0 %v646, 96
  %v649 = vpop.permute.xlu0 %648
  %v651 = vsel %vm155, %v649, 0
  %653 = vmatprep.subr.bf16.mxu0 0
  %654 = vmatpush1.bf16.msra.mxu0 %v151
  %655 = vmatprep.subr.bf16.mxu0 0
  %656 = vmatpush1.bf16.msra.mxu0 %v152
  %657 = vmatprep.subr.bf16.mxu0 0
  %658 = vmatpush1.bf16.msra.mxu0 0
  %659 = vmatprep.subr.bf16.mxu0 0
  %660 = vmatpush1.bf16.msra.mxu0 0
  %661 = vmatprep.subr.bf16.mxu0 0
  %662 = vmatpush1.bf16.msra.mxu0 0
  %663 = vmatprep.subr.bf16.mxu0 0
  %664 = vmatpush1.bf16.msra.mxu0 0
  %665 = vmatprep.subr.bf16.mxu0 0
  %666 = vmatpush1.bf16.msra.mxu0 0
  %667 = vmatprep.subr.bf16.mxu0 0
  %668 = vmatpush1.bf16.msra.mxu0 0
  %669 = vmatprep.subr.bf16.mxu0 0
  %670 = vmatpush1.bf16.msra.mxu0 0
  %671 = vmatprep.subr.bf16.mxu0 0
  %672 = vmatpush1.bf16.msra.mxu0 0
  %673 = vmatprep.subr.bf16.mxu0 0
  %674 = vmatpush1.bf16.msra.mxu0 0
  %675 = vmatprep.subr.bf16.mxu0 0
  %676 = vmatpush1.bf16.msra.mxu0 0
  %677 = vmatprep.subr.bf16.mxu0 0
  %678 = vmatpush1.bf16.msra.mxu0 0
  %679 = vmatprep.subr.bf16.mxu0 0
  %680 = vmatpush1.bf16.msra.mxu0 0
  %681 = vmatprep.subr.bf16.mxu0 0
  %682 = vmatpush1.bf16.msra.mxu0 0
  %683 = vmatprep.subr.bf16.mxu0 0
  %684 = vmatpush1.bf16.msra.mxu0 0
  %685 = vmatprep.mubr.bf16.mxu0 0
  %686 = vmatmul.mubr.bf16.gmra.mrb[0].mxu0 %v651
  %v687 = vpop.f32.mrb[0].mxu0
  %v688 = vadd.f32 0.0, %v687
  %v689 = vpop.f32.mrb[0].mxu0
  %v690 = vpop.f32.mrb[0].mxu0
  %v691 = vpop.f32.mrb[0].mxu0
  %692 = vdwg.mxu0
  %v693 = vadd.f32 %v645, %v688
  %v694 = vxor.u32 %v693, 2147483648
  %v695 = vmul.f32 %v694, 1.442695
  %v696 = vpow.pop %v695
  %v697 = vadd.f32 %v696, 1.0
  %v698 = vrcp.pop %v697
  %v699 = vmul.f32 1.0, %v698
  %v700 = vadd.f32 %v688, %v212
  %702 = vrot.lane.b32.xlu0 %v700, 64
  %v703 = vpop.permute.xlu0 %702
  %v705 = vmul.f32 %v699, %v703
  %707 = vrot.lane.b32.xlu0 %v705, 64
  %v708 = vpop.permute.xlu0 %707
  %v710 = vadd.f32 %v645, %v708
  %v711 = vtanh.pop %v710
  %v712 = vsub.f32 1.0, %v699
  %714 = vrot.lane.b32.xlu0 %v711, 96
  %v715 = vpop.permute.xlu0 %714
  %v717 = vmul.f32 %v712, %v715
  %v718 = vmul.f32 %v699, %v638
  %v719 = vadd.f32 %v717, %v718
  %v720 = vmax.f32 %v719, 0.0
  %722 = vrot.lane.b32.xlu0 %v720, 96
  %v723 = vpop.permute.xlu0 %722
  %725 = vst.msk [vmem:[#allocation3 + $0x30] sm:$0xff] %vm155, %v723
  %v726 = vld [vmem:[#allocation2 + $0x38] sm:$0xff]
  %v727 = vpack.c.bf16 %v719, %v719
  %729 = vrot.lane.b32.xlu0 %v727, 96
  %v730 = vpop.permute.xlu0 %729
  %v732 = vsel %vm155, %v730, 0
  %734 = vmatprep.subr.bf16.mxu0 0
  %735 = vmatpush1.bf16.msra.mxu0 %v151
  %736 = vmatprep.subr.bf16.mxu0 0
  %737 = vmatpush1.bf16.msra.mxu0 %v152
  %738 = vmatprep.subr.bf16.mxu0 0
  %739 = vmatpush1.bf16.msra.mxu0 0
  %740 = vmatprep.subr.bf16.mxu0 0
  %741 = vmatpush1.bf16.msra.mxu0 0
  %742 = vmatprep.subr.bf16.mxu0 0
  %743 = vmatpush1.bf16.msra.mxu0 0
  %744 = vmatprep.subr.bf16.mxu0 0
  %745 = vmatpush1.bf16.msra.mxu0 0
  %746 = vmatprep.subr.bf16.mxu0 0
  %747 = vmatpush1.bf16.msra.mxu0 0
  %748 = vmatprep.subr.bf16.mxu0 0
  %749 = vmatpush1.bf16.msra.mxu0 0
  %750 = vmatprep.subr.bf16.mxu0 0
  %751 = vmatpush1.bf16.msra.mxu0 0
  %752 = vmatprep.subr.bf16.mxu0 0
  %753 = vmatpush1.bf16.msra.mxu0 0
  %754 = vmatprep.subr.bf16.mxu0 0
  %755 = vmatpush1.bf16.msra.mxu0 0
  %756 = vmatprep.subr.bf16.mxu0 0
  %757 = vmatpush1.bf16.msra.mxu0 0
  %758 = vmatprep.subr.bf16.mxu0 0
  %759 = vmatpush1.bf16.msra.mxu0 0
  %760 = vmatprep.subr.bf16.mxu0 0
  %761 = vmatpush1.bf16.msra.mxu0 0
  %762 = vmatprep.subr.bf16.mxu0 0
  %763 = vmatpush1.bf16.msra.mxu0 0
  %764 = vmatprep.subr.bf16.mxu0 0
  %765 = vmatpush1.bf16.msra.mxu0 0
  %766 = vmatprep.mubr.bf16.mxu0 0
  %767 = vmatmul.mubr.bf16.gmra.mrb[0].mxu0 %v732
  %v768 = vpop.f32.mrb[0].mxu0
  %v769 = vadd.f32 0.0, %v768
  %v770 = vpop.f32.mrb[0].mxu0
  %v771 = vpop.f32.mrb[0].mxu0
  %v772 = vpop.f32.mrb[0].mxu0
  %773 = vdwg.mxu0
  %v774 = vadd.f32 %v726, %v769
  %v775 = vxor.u32 %v774, 2147483648
  %v776 = vmul.f32 %v775, 1.442695
  %v777 = vpow.pop %v776
  %v778 = vadd.f32 %v777, 1.0
  %v779 = vrcp.pop %v778
  %v780 = vmul.f32 1.0, %v779
  %v781 = vadd.f32 %v769, %v212
  %783 = vrot.lane.b32.xlu0 %v781, 64
  %v784 = vpop.permute.xlu0 %783
  %v786 = vmul.f32 %v780, %v784
  %788 = vrot.lane.b32.xlu0 %v786, 64
  %v789 = vpop.permute.xlu0 %788
  %v791 = vadd.f32 %v726, %v789
  %v792 = vtanh.pop %v791
  %v793 = vsub.f32 1.0, %v780
  %795 = vrot.lane.b32.xlu0 %v792, 96
  %v796 = vpop.permute.xlu0 %795
  %v798 = vmul.f32 %v793, %v796
  %v799 = vmul.f32 %v780, %v719
  %v800 = vadd.f32 %v798, %v799
  %v801 = vmax.f32 %v800, 0.0
  %803 = vrot.lane.b32.xlu0 %v801, 96
  %v804 = vpop.permute.xlu0 %803
  %806 = vst.msk [vmem:[#allocation3 + $0x38] sm:$0xff] %vm155, %v804
  %v807 = vld [vmem:[#allocation3] sm:$0xff]
  %v808 = vld [vmem:[#allocation3 + $0x8] sm:$0xff]
  %v809 = vld [vmem:[#allocation3 + $0x10] sm:$0xff]
  %v810 = vld [vmem:[#allocation3 + $0x18] sm:$0xff]
  %v811 = vld [vmem:[#allocation3 + $0x20] sm:$0xff]
  %v812 = vld [vmem:[#allocation3 + $0x28] sm:$0xff]
  %v813 = vld [vmem:[#allocation3 + $0x30] sm:$0xff]
  %v814 = vld [vmem:[#allocation3 + $0x38] sm:$0xff]
  %v815 = vpack.c.bf16 %v808, %v807
  %v816 = vpack.c.bf16 %v810, %v809
  %v817 = vpack.c.bf16 %v812, %v811
  %v818 = vpack.c.bf16 %v814, %v813
  %v819 = vld [vmem:[%s5] sm:$0xf]
  %v820 = vld [vmem:[%s5 + $0x4] sm:$0xf]
  %v821 = vld [vmem:[%s5 + $0x8] sm:$0xf]
  %v822 = vld [vmem:[%s5 + $0xc] sm:$0xf]
  %v823 = vld [vmem:[%s6] sm:$0x1]
  %v825 = vlaneseq
  %v826 = vshrl.u32 %v825, 7
  %v827 = vsub.s32 0, %v826
  %v828 = vrot.slane %v823, %v827
  %v834 = vunpack.c.l.b16 %v819
  %v835 = vunpack.c.l.b16 %v820
  %v836 = vunpack.c.l.b16 %v821
  %v837 = vunpack.c.l.b16 %v822
  %v838 = vpack.c.b16 %v835, %v834
  %v839 = vpack.c.b16 %v837, %v836
  %v843 = vsel %vm155, %v815, 0
  %v846 = vsel %vm155, %v816, 0
  %v849 = vsel %vm155, %v817, 0
  %v852 = vsel %vm155, %v818, 0
  %854 = vmatprep.subr.bf16.mxu0 0
  %855 = vmatpush1.bf16.msra.mxu0 %v838
  %856 = vmatprep.subr.bf16.mxu0 0
  %857 = vmatpush1.bf16.msra.mxu0 %v839
  %858 = vmatprep.subr.bf16.mxu0 0
  %859 = vmatpush1.bf16.msra.mxu0 0
  %860 = vmatprep.subr.bf16.mxu0 0
  %861 = vmatpush1.bf16.msra.mxu0 0
  %862 = vmatprep.subr.bf16.mxu0 0
  %863 = vmatpush1.bf16.msra.mxu0 0
  %864 = vmatprep.subr.bf16.mxu0 0
  %865 = vmatpush1.bf16.msra.mxu0 0
  %866 = vmatprep.subr.bf16.mxu0 0
  %867 = vmatpush1.bf16.msra.mxu0 0
  %868 = vmatprep.subr.bf16.mxu0 0
  %869 = vmatpush1.bf16.msra.mxu0 0
  %870 = vmatprep.subr.bf16.mxu0 0
  %871 = vmatpush1.bf16.msra.mxu0 0
  %872 = vmatprep.subr.bf16.mxu0 0
  %873 = vmatpush1.bf16.msra.mxu0 0
  %874 = vmatprep.subr.bf16.mxu0 0
  %875 = vmatpush1.bf16.msra.mxu0 0
  %876 = vmatprep.subr.bf16.mxu0 0
  %877 = vmatpush1.bf16.msra.mxu0 0
  %878 = vmatprep.subr.bf16.mxu0 0
  %879 = vmatpush1.bf16.msra.mxu0 0
  %880 = vmatprep.subr.bf16.mxu0 0
  %881 = vmatpush1.bf16.msra.mxu0 0
  %882 = vmatprep.subr.bf16.mxu0 0
  %883 = vmatpush1.bf16.msra.mxu0 0
  %884 = vmatprep.subr.bf16.mxu0 0
  %885 = vmatpush1.bf16.msra.mxu0 0
  %886 = vmatprep.mubr.bf16.mxu0 0
  %887 = vmatmul.mubr.bf16.gmra.mrb[0].mxu0 %v843
  %v888 = vpop.f32.mrb[0].mxu0
  %v889 = vadd.f32 %v828, %v888
  %v890 = vpop.f32.mrb[0].mxu0
  %v891 = vpop.f32.mrb[0].mxu0
  %v892 = vadd.f32 %v828, %v891
  %v893 = vpop.f32.mrb[0].mxu0
  %894 = vmatprep.mubr.bf16.mxu0 0
  %895 = vmatmul.mubr.bf16.gmra.mrb[0].mxu0 %v846
  %v896 = vpop.f32.mrb[0].mxu0
  %v897 = vadd.f32 %v828, %v896
  %v898 = vpop.f32.mrb[0].mxu0
  %v899 = vpop.f32.mrb[0].mxu0
  %v900 = vadd.f32 %v828, %v899
  %v901 = vpop.f32.mrb[0].mxu0
  %902 = vmatprep.mubr.bf16.mxu0 0
  %903 = vmatmul.mubr.bf16.gmra.mrb[0].mxu0 %v849
  %v904 = vpop.f32.mrb[0].mxu0
  %v905 = vadd.f32 %v828, %v904
  %v906 = vpop.f32.mrb[0].mxu0
  %v907 = vpop.f32.mrb[0].mxu0
  %v908 = vadd.f32 %v828, %v907
  %v909 = vpop.f32.mrb[0].mxu0
  %910 = vmatprep.mubr.bf16.mxu0 0
  %911 = vmatmul.mubr.bf16.gmra.mrb[0].mxu0 %v852
  %v912 = vpop.f32.mrb[0].mxu0
  %v913 = vadd.f32 %v828, %v912
  %v914 = vpop.f32.mrb[0].mxu0
  %v915 = vpop.f32.mrb[0].mxu0
  %v916 = vadd.f32 %v828, %v915
  %v917 = vpop.f32.mrb[0].mxu0
  %918 = vdwg.mxu0
  %919 = vst [vmem:[%s7] sm:$0xff] %v889
  %920 = vst [vmem:[%s7 + $0x8] sm:$0xff] %v892
  %921 = vst [vmem:[%s7 + $0x10] sm:$0xff] %v897
  %922 = vst [vmem:[%s7 + $0x18] sm:$0xff] %v900
  %923 = vst [vmem:[%s7 + $0x20] sm:$0xff] %v905
  %924 = vst [vmem:[%s7 + $0x28] sm:$0xff] %v908
  %925 = vst [vmem:[%s7 + $0x30] sm:$0xff] %v913
  %926 = vst [vmem:[%s7 + $0x38] sm:$0xff] %v916
  // Predicated region
  $region30: #{gru_regression_forward.1} parent=0 // pred_check
    _
  $region31: #{gru_regression_forward.1} parent=0 // pred_check_branch
    %928 = sbr.rel (0) target = $region33
  $region32: #{gru_regression_forward.1} parent=0 // pred_region
    _
  $region33: #{gru_regression_forward.1} parent=0 // pred_fallthru
    _
  // Predicated region
  $region34: #{gru_regression_forward.1} parent=0 // pred_check
    _
  $region35: #{gru_regression_forward.1} parent=0 // pred_check_branch
    %930 = sbr.rel (0) target = $region37
  $region36: #{gru_regression_forward.1} parent=0 // pred_region
    _
  $region37: #{gru_regression_forward.1} parent=0 // pred_fallthru
    _

</llo_original>
